<compile_context>
chip_gen: v7x
topology: tpu7x:2x2x1
jax: 0.10.0
libtpu: 0.0.40
codegen_flags: <defaults>
</compile_context>

<pallas_src>
import functools

import jax
import jax.numpy as jnp
import numpy as np
from jax.experimental import pallas as pl
from jax.experimental.pallas import tpu as pltpu

C1 = 16     # conv1 / depthwise channels
C2 = 32     # pointwise output channels
KTAPS = 9   # 3x3 taps


# --------------------------- fused forward kernel ---------------------------

def _kernel(x_ref, mask1_ref, w1_ref, s1_ref, t1_ref,
            maskdw_ref, wdw_ref, sdw_ref, tdw_ref,
            wpw_ref, spw_ref, tpw_ref,
            pool2_ref, spread_ref, msel_ref,
            fc1w_ref, fc1b_ref, fc2w_ref, fc2b_ref,
            out_ref, *, H, W):
    HW = H * W                       # 256
    F = (H // 4) * (W // 4)          # 16 features per channel after two pools

    x = x_ref[0]                     # (1, HW) single input channel, flattened

    # ---- conv1 (1 -> C1, 3x3, pad 1) + bn1 + relu: 9 VPU broadcast-MACs ----
    # Taps via 256-lane XLU rolls; mask1 zeroes wrapped (out-of-image) lanes.
    y1 = w1_ref[:, 4:5] * x                                   # centre tap
    for ky in range(3):
        for kx in range(3):
            if ky == 1 and kx == 1:
                continue
            k = ky * 3 + kx
            s = (ky - 1) * W + (kx - 1)
            tap = pltpu.roll(x, (-s) % HW, axis=1) * mask1_ref[k:k + 1, :]
            y1 = y1 + w1_ref[:, k:k + 1] * tap
    y1 = jnp.maximum(y1 * s1_ref[...] + t1_ref[...], 0.0)     # (C1, HW)

    # ---- maxpool 2x2: pairwise max via lane rolls.  The pooled map lives at
    # the even-(h,w) "anchor" lanes; wrap garbage elsewhere is never read.
    m = jnp.maximum(y1, pltpu.roll(y1, HW - 1, axis=1))
    m = jnp.maximum(m, pltpu.roll(m, HW - W, axis=1))         # (C1, HW)

    # ---- depthwise 3x3 (groups=C1) + bn_dw + relu, carried on the 256-lane
    # grid: taps are even-offset rolls of m (anchor -> anchor); maskdw supplies
    # the pooled map's zero padding.  9 VPU broadcast-MACs, no MXU work.
    acc = wdw_ref[:, 4:5] * m                                 # centre tap
    for ky in range(3):
        for kx in range(3):
            if ky == 1 and kx == 1:
                continue
            k = ky * 3 + kx
            s2 = 2 * ((ky - 1) * W + (kx - 1))
            tap = pltpu.roll(m, (-s2) % HW, axis=1) * maskdw_ref[k:k + 1, :]
            acc = acc + wdw_ref[:, k:k + 1] * tap
    y2 = jnp.maximum(acc * sdw_ref[...] + tdw_ref[...], 0.0)  # (C1, HW)

    # ---- pointwise 1x1 (C1 -> C2) + bn_pw + relu: one lane-dense matmul ----
    y3 = jnp.dot(wpw_ref[...], y2, preferred_element_type=jnp.float32)   # (C2, HW)
    y3 = jnp.maximum(y3 * spw_ref[...] + tpw_ref[...], 0.0)

    # ---- maxpool 2x2 -> 4x4: ONE corner-gather matmul + 3 maxima on slices --
    u = jnp.dot(y3, pool2_ref[...], preferred_element_type=jnp.float32)  # (C2, 4F)
    f = u[:, 0:F]
    for o in range(1, 4):
        f = jnp.maximum(f, u[:, o * F:(o + 1) * F])           # (C2, F)

    # ---- flatten (torch order c*F + r) + fc1 + relu, without scratch stores --
    # spread[c, j] = f[c, j mod F]; msel keeps only the j // F == c block, so
    # sum_c ((spread * msel) @ W1)[c] == flatten(f) @ W1.
    spread = jnp.dot(f, spread_ref[...], preferred_element_type=jnp.float32)  # (C2, C2*F)
    hc = jnp.dot(spread * msel_ref[...], fc1w_ref[...],
                 preferred_element_type=jnp.float32)           # (C2, 64)
    h = jnp.maximum(jnp.sum(hc, axis=0, keepdims=True) + fc1b_ref[...], 0.0)
    # dropout(p=0.5) is identity at inference time

    # ---- fc2 into a full 128-lane row (sliced to num_classes in the wrapper) --
    out_ref[0] = jnp.dot(h, fc2w_ref[...],
                         preferred_element_type=jnp.float32) + fc2b_ref[...]


# --------------------- data-independent constant operands ---------------------

def _build_constants(H, W):
    HW = H * W
    H2, W2 = H // 2, W // 2
    H4, W4 = H2 // 2, W2 // 2
    F = H4 * W4

    p = np.arange(HW)
    ph, pw = p // W, p % W

    # conv1 tap validity on the full H x W grid, and depthwise tap validity
    # expressed on the full grid via pooled coordinates (k = ky*3 + kx).
    mask1 = np.zeros((KTAPS, HW), np.float32)
    maskdw = np.zeros((KTAPS, HW), np.float32)
    for ky in range(3):
        for kx in range(3):
            dy, dx = ky - 1, kx - 1
            k = ky * 3 + kx
            mask1[k] = ((ph + dy >= 0) & (ph + dy < H) &
                        (pw + dx >= 0) & (pw + dx < W)).astype(np.float32)
            maskdw[k] = ((ph // 2 + dy >= 0) & (ph // 2 + dy < H2) &
                         (pw // 2 + dx >= 0) & (pw // 2 + dx < W2)).astype(np.float32)

    # second maxpool + flatten-prep gather: column o*F + r reads the full-grid
    # anchor lane of pooled pixel (2*rh + oy, 2*rw + ox).
    r = np.arange(F)
    rh, rw = r // W4, r % W4
    pool2g = np.zeros((HW, 4 * F), np.float32)
    for o, (oy, ox) in enumerate(((0, 0), (0, 1), (1, 0), (1, 1))):
        src = 2 * (2 * rh + oy) * W + 2 * (2 * rw + ox)
        pool2g[src, o * F + r] = 1.0

    # flatten helpers: replicate the F features across the C2*F lane axis and
    # select the block-diagonal (channel c owns lanes [c*F, (c+1)*F)).
    j = np.arange(C2 * F)
    spreadp = (j[None, :] % F == r[:, None]).astype(np.float32)             # (F, C2*F)
    msel = (j[None, :] // F == np.arange(C2)[:, None]).astype(np.float32)   # (C2, C2*F)

    return (jnp.asarray(mask1), jnp.asarray(maskdw), jnp.asarray(pool2g),
            jnp.asarray(spreadp), jnp.asarray(msel))


# ----------------------------------- wrapper -----------------------------------

def forward(x, params, consts=None):
    B, H, W = x.shape
    HW = H * W
    nc = params["fc2_w"].shape[-1]
    npad = ((nc + 127) // 128) * 128          # lane-dense logits row
    if consts is None:
        consts = _build_constants(H, W)
    mask1, maskdw, pool2g, spreadp, msel = consts

    x3 = x.reshape(B, 1, HW).astype(jnp.float32)
    nh = params["fc2_w"].shape[0]
    fc2w_pad = jnp.zeros((nh, npad), jnp.float32).at[:, :nc].set(params["fc2_w"])
    fc2b_pad = jnp.zeros((1, npad), jnp.float32).at[:, :nc].set(
        params["fc2_b"].reshape(1, nc))

    operands = (x3, mask1, params["w1"], params["s1"], params["t1"],
                maskdw, params["wdw"], params["sdw"], params["tdw"],
                params["wpw"], params["spw"], params["tpw"],
                pool2g, spreadp, msel,
                params["fc1_w"], params["fc1_b"], fc2w_pad, fc2b_pad)

    def _const_spec(a):
        assert a.ndim == 2
        return pl.BlockSpec(a.shape, lambda b: (0, 0))

    in_specs = [pl.BlockSpec((1, 1, HW), lambda b: (b, 0, 0))]
    in_specs += [_const_spec(a) for a in operands[1:]]

    out = pl.pallas_call(
        functools.partial(_kernel, H=H, W=W),
        out_shape=jax.ShapeDtypeStruct((B, 1, npad), jnp.float32),
        grid=(B,),
        in_specs=in_specs,
        out_specs=pl.BlockSpec((1, 1, npad), lambda b: (b, 0, 0)),
        compiler_params=pltpu.CompilerParams(
            dimension_semantics=("parallel",)),
    )(*operands)
    return out[:, 0, :nc]


# ---------------------- deterministic parameter initialization ----------------------

def init_params(key, num_classes, n_mels, time_dim):
    eps = 1e-5
    ks = iter(jax.random.split(key, 32))
    nrm = lambda shape, s=0.1: s * jax.random.normal(next(ks), shape, jnp.float32)

    def bn_fold(c, conv_bias):
        gamma = 1.0 + nrm((c,))
        beta = nrm((c,))
        mean = nrm((c,))
        var = jax.random.uniform(next(ks), (c,), jnp.float32, 0.5, 1.5)
        scale = gamma / jnp.sqrt(var + eps)
        shift = beta - mean * scale + conv_bias * scale
        return scale.reshape(c, 1), shift.reshape(c, 1)

    w1 = nrm((C1, 1, 3, 3)); b1 = nrm((C1,))
    s1, t1 = bn_fold(C1, b1)
    wdw = nrm((C1, 1, 3, 3)); bdw = nrm((C1,))
    sdw, tdw = bn_fold(C1, bdw)
    wpw = nrm((C2, C1, 1, 1)); bpw = nrm((C2,))
    spw, tpw = bn_fold(C2, bpw)

    flattened = C2 * (n_mels // 4) * (time_dim // 4)
    # NOTE: fc weights stored as (in, out) = transpose of PyTorch nn.Linear.
    fc1_w = nrm((flattened, 64), 0.05); fc1_b = nrm((64,))
    fc2_w = nrm((64, num_classes)); fc2_b = nrm((num_classes,))

    return dict(
        w1=w1.reshape(C1, KTAPS), s1=s1, t1=t1,
        wdw=wdw.reshape(C1, KTAPS), sdw=sdw, tdw=tdw,
        wpw=wpw.reshape(C2, C1), spw=spw, tpw=tpw,
        fc1_w=fc1_w, fc1_b=fc1_b.reshape(1, 64),
        fc2_w=fc2_w, fc2_b=fc2_b.reshape(1, -1),
    )


# ------------------------- pure-JAX reference (eval mode) -------------------------

def _pool2x2(x):
    B, C, H, W = x.shape
    return x.reshape(B, C, H // 2, 2, W // 2, 2).max(axis=(3, 5))


def reference_forward(x, params):
    B, H, W = x.shape
    hi = jax.lax.Precision.HIGHEST
    dn = ("NCHW", "OIHW", "NCHW")
    xi = x[:, None, :, :].astype(jnp.float32)

    y = jax.lax.conv_general_dilated(xi, params["w1"].reshape(C1, 1, 3, 3),
                                     (1, 1), ((1, 1), (1, 1)),
                                     dimension_numbers=dn, precision=hi)
    y = jnp.maximum(y * params["s1"].reshape(1, C1, 1, 1)
                    + params["t1"].reshape(1, C1, 1, 1), 0.0)
    y = _pool2x2(y)
    y = jax.lax.conv_general_dilated(y, params["wdw"].reshape(C1, 1, 3, 3),
                                     (1, 1), ((1, 1), (1, 1)),
                                     dimension_numbers=dn,
                                     feature_group_count=C1, precision=hi)
    y = jnp.maximum(y * params["sdw"].reshape(1, C1, 1, 1)
                    + params["tdw"].reshape(1, C1, 1, 1), 0.0)
    y = jax.lax.conv_general_dilated(y, params["wpw"].reshape(C2, C1, 1, 1),
                                     (1, 1), ((0, 0), (0, 0)),
                                     dimension_numbers=dn, precision=hi)
    y = jnp.maximum(y * params["spw"].reshape(1, C2, 1, 1)
                    + params["tpw"].reshape(1, C2, 1, 1), 0.0)
    y = _pool2x2(y)
    feat = y.reshape(B, -1)
    h = jnp.maximum(jnp.dot(feat, params["fc1_w"], precision=hi)
                    + params["fc1_b"], 0.0)
    return jnp.dot(h, params["fc2_w"], precision=hi) + params["fc2_b"]


if __name__ == "__main__":
    num_classes = 4
    n_mels = 16
    fixed_length = 15 * 1024              # hop_length=1024 -> time_dim = 16
    time_dim = fixed_length // 1024 + 1
    B = 2

    key = jax.random.PRNGKey(0)
    kx, kp = jax.random.split(key)
    x = jax.random.normal(kx, (B, n_mels, time_dim), jnp.float32)
    params = init_params(kp, num_classes, n_mels, time_dim)
    consts = _build_constants(n_mels, time_dim)

    logits = forward(x, params, consts)
    jax.block_until_ready(logits)
    assert logits.shape == (B, num_classes)

    ref = reference_forward(x, params)
    np.testing.assert_allclose(np.asarray(logits), np.asarray(ref),
                               rtol=1e-2, atol=1e-2)
    print("KERNEL_OK")
</pallas_src>

<mosaic_0001>
module attributes {stable_mosaic.version = 11 : i64} {
  func.func @_kernel(%arg0: i32, %arg1: memref<1x1x256xf32, #tpu.memory_space<vmem>>, %arg2: memref<9x256xf32, #tpu.memory_space<vmem>>, %arg3: memref<16x9xf32, #tpu.memory_space<vmem>>, %arg4: memref<16x1xf32, #tpu.memory_space<vmem>>, %arg5: memref<16x1xf32, #tpu.memory_space<vmem>>, %arg6: memref<9x256xf32, #tpu.memory_space<vmem>>, %arg7: memref<16x9xf32, #tpu.memory_space<vmem>>, %arg8: memref<16x1xf32, #tpu.memory_space<vmem>>, %arg9: memref<16x1xf32, #tpu.memory_space<vmem>>, %arg10: memref<32x16xf32, #tpu.memory_space<vmem>>, %arg11: memref<32x1xf32, #tpu.memory_space<vmem>>, %arg12: memref<32x1xf32, #tpu.memory_space<vmem>>, %arg13: memref<256x64xf32, #tpu.memory_space<vmem>>, %arg14: memref<16x512xf32, #tpu.memory_space<vmem>>, %arg15: memref<32x512xf32, #tpu.memory_space<vmem>>, %arg16: memref<512x64xf32, #tpu.memory_space<vmem>>, %arg17: memref<1x64xf32, #tpu.memory_space<vmem>>, %arg18: memref<64x128xf32, #tpu.memory_space<vmem>>, %arg19: memref<1x128xf32, #tpu.memory_space<vmem>>, %arg20: memref<1x1x128xf32, #tpu.memory_space<vmem>>) attributes {dimension_semantics = [#tpu.dimension_semantics<parallel>], iteration_bounds = array<i64: 2>, scalar_prefetch = 0 : i64, scratch_operands = 0 : i64, tpu.core_type = #tpu.core_type<tc>, window_params = [{transform_indices = @transform_0, window_bounds = array<i64: 1, 1, 256>}, {pipeline_mode = #tpu.pipeline_mode<synchronous>, transform_indices = @transform_1, window_bounds = array<i64: 9, 256>}, {pipeline_mode = #tpu.pipeline_mode<synchronous>, transform_indices = @transform_2, window_bounds = array<i64: 16, 9>}, {pipeline_mode = #tpu.pipeline_mode<synchronous>, transform_indices = @transform_3, window_bounds = array<i64: 16, 1>}, {pipeline_mode = #tpu.pipeline_mode<synchronous>, transform_indices = @transform_4, window_bounds = array<i64: 16, 1>}, {pipeline_mode = #tpu.pipeline_mode<synchronous>, transform_indices = @transform_5, window_bounds = array<i64: 9, 256>}, {pipeline_mode = #tpu.pipeline_mode<synchronous>, transform_indices = @transform_6, window_bounds = array<i64: 16, 9>}, {pipeline_mode = #tpu.pipeline_mode<synchronous>, transform_indices = @transform_7, window_bounds = array<i64: 16, 1>}, {pipeline_mode = #tpu.pipeline_mode<synchronous>, transform_indices = @transform_8, window_bounds = array<i64: 16, 1>}, {pipeline_mode = #tpu.pipeline_mode<synchronous>, transform_indices = @transform_9, window_bounds = array<i64: 32, 16>}, {pipeline_mode = #tpu.pipeline_mode<synchronous>, transform_indices = @transform_10, window_bounds = array<i64: 32, 1>}, {pipeline_mode = #tpu.pipeline_mode<synchronous>, transform_indices = @transform_11, window_bounds = array<i64: 32, 1>}, {pipeline_mode = #tpu.pipeline_mode<synchronous>, transform_indices = @transform_12, window_bounds = array<i64: 256, 64>}, {pipeline_mode = #tpu.pipeline_mode<synchronous>, transform_indices = @transform_13, window_bounds = array<i64: 16, 512>}, {pipeline_mode = #tpu.pipeline_mode<synchronous>, transform_indices = @transform_14, window_bounds = array<i64: 32, 512>}, {pipeline_mode = #tpu.pipeline_mode<synchronous>, transform_indices = @transform_15, window_bounds = array<i64: 512, 64>}, {pipeline_mode = #tpu.pipeline_mode<synchronous>, transform_indices = @transform_16, window_bounds = array<i64: 1, 64>}, {pipeline_mode = #tpu.pipeline_mode<synchronous>, transform_indices = @transform_17, window_bounds = array<i64: 64, 128>}, {pipeline_mode = #tpu.pipeline_mode<synchronous>, transform_indices = @transform_18, window_bounds = array<i64: 1, 128>}, {transform_indices = @transform_19, window_bounds = array<i64: 1, 1, 128>}]} {
    %c0 = arith.constant 0 : index
    %c0_0 = arith.constant 0 : index
    %c0_1 = arith.constant 0 : index
    %0 = vector.load %arg1[%c0, %c0_0, %c0_1] : memref<1x1x256xf32, #tpu.memory_space<vmem>>, vector<1x1x256xf32>
    %1 = vector.shape_cast %0 : vector<1x1x256xf32> to vector<1x256xf32>
    %c0_2 = arith.constant 0 : index
    %c4 = arith.constant 4 : index
    %2 = vector.load %arg3[%c0_2, %c4] : memref<16x9xf32, #tpu.memory_space<vmem>>, vector<16x1xf32>
    %3 = vector.broadcast %2 : vector<16x1xf32> to vector<16x256xf32>
    %4 = vector.broadcast %1 : vector<1x256xf32> to vector<16x256xf32>
    %5 = arith.mulf %3, %4 : vector<16x256xf32>
    %c17_i32 = arith.constant 17 : i32
    %6 = tpu.dynamic_rotate %1 by %c17_i32 dim 1 : vector<1x256xf32>, i32 -> vector<1x256xf32>
    %c0_3 = arith.constant 0 : index
    %c0_4 = arith.constant 0 : index
    %7 = vector.load %arg2[%c0_3, %c0_4] : memref<9x256xf32, #tpu.memory_space<vmem>>, vector<1x256xf32>
    %8 = arith.mulf %6, %7 : vector<1x256xf32>
    %c0_5 = arith.constant 0 : index
    %c0_6 = arith.constant 0 : index
    %9 = vector.load %arg3[%c0_5, %c0_6] : memref<16x9xf32, #tpu.memory_space<vmem>>, vector<16x1xf32>
    %10 = vector.broadcast %9 : vector<16x1xf32> to vector<16x256xf32>
    %11 = vector.broadcast %8 : vector<1x256xf32> to vector<16x256xf32>
    %12 = arith.mulf %10, %11 : vector<16x256xf32>
    %13 = arith.addf %5, %12 : vector<16x256xf32>
    %c16_i32 = arith.constant 16 : i32
    %14 = tpu.dynamic_rotate %1 by %c16_i32 dim 1 : vector<1x256xf32>, i32 -> vector<1x256xf32>
    %c1 = arith.constant 1 : index
    %c0_7 = arith.constant 0 : index
    %15 = vector.load %arg2[%c1, %c0_7] : memref<9x256xf32, #tpu.memory_space<vmem>>, vector<1x256xf32>
    %16 = arith.mulf %14, %15 : vector<1x256xf32>
    %c0_8 = arith.constant 0 : index
    %c1_9 = arith.constant 1 : index
    %17 = vector.load %arg3[%c0_8, %c1_9] : memref<16x9xf32, #tpu.memory_space<vmem>>, vector<16x1xf32>
    %18 = vector.broadcast %17 : vector<16x1xf32> to vector<16x256xf32>
    %19 = vector.broadcast %16 : vector<1x256xf32> to vector<16x256xf32>
    %20 = arith.mulf %18, %19 : vector<16x256xf32>
    %21 = arith.addf %13, %20 : vector<16x256xf32>
    %c15_i32 = arith.constant 15 : i32
    %22 = tpu.dynamic_rotate %1 by %c15_i32 dim 1 : vector<1x256xf32>, i32 -> vector<1x256xf32>
    %c2 = arith.constant 2 : index
    %c0_10 = arith.constant 0 : index
    %23 = vector.load %arg2[%c2, %c0_10] : memref<9x256xf32, #tpu.memory_space<vmem>>, vector<1x256xf32>
    %24 = arith.mulf %22, %23 : vector<1x256xf32>
    %c0_11 = arith.constant 0 : index
    %c2_12 = arith.constant 2 : index
    %25 = vector.load %arg3[%c0_11, %c2_12] : memref<16x9xf32, #tpu.memory_space<vmem>>, vector<16x1xf32>
    %26 = vector.broadcast %25 : vector<16x1xf32> to vector<16x256xf32>
    %27 = vector.broadcast %24 : vector<1x256xf32> to vector<16x256xf32>
    %28 = arith.mulf %26, %27 : vector<16x256xf32>
    %29 = arith.addf %21, %28 : vector<16x256xf32>
    %c1_i32 = arith.constant 1 : i32
    %30 = tpu.dynamic_rotate %1 by %c1_i32 dim 1 : vector<1x256xf32>, i32 -> vector<1x256xf32>
    %c3 = arith.constant 3 : index
    %c0_13 = arith.constant 0 : index
    %31 = vector.load %arg2[%c3, %c0_13] : memref<9x256xf32, #tpu.memory_space<vmem>>, vector<1x256xf32>
    %32 = arith.mulf %30, %31 : vector<1x256xf32>
    %c0_14 = arith.constant 0 : index
    %c3_15 = arith.constant 3 : index
    %33 = vector.load %arg3[%c0_14, %c3_15] : memref<16x9xf32, #tpu.memory_space<vmem>>, vector<16x1xf32>
    %34 = vector.broadcast %33 : vector<16x1xf32> to vector<16x256xf32>
    %35 = vector.broadcast %32 : vector<1x256xf32> to vector<16x256xf32>
    %36 = arith.mulf %34, %35 : vector<16x256xf32>
    %37 = arith.addf %29, %36 : vector<16x256xf32>
    %c255_i32 = arith.constant 255 : i32
    %38 = tpu.dynamic_rotate %1 by %c255_i32 dim 1 : vector<1x256xf32>, i32 -> vector<1x256xf32>
    %c5 = arith.constant 5 : index
    %c0_16 = arith.constant 0 : index
    %39 = vector.load %arg2[%c5, %c0_16] : memref<9x256xf32, #tpu.memory_space<vmem>>, vector<1x256xf32>
    %40 = arith.mulf %38, %39 : vector<1x256xf32>
    %c0_17 = arith.constant 0 : index
    %c5_18 = arith.constant 5 : index
    %41 = vector.load %arg3[%c0_17, %c5_18] : memref<16x9xf32, #tpu.memory_space<vmem>>, vector<16x1xf32>
    %42 = vector.broadcast %41 : vector<16x1xf32> to vector<16x256xf32>
    %43 = vector.broadcast %40 : vector<1x256xf32> to vector<16x256xf32>
    %44 = arith.mulf %42, %43 : vector<16x256xf32>
    %45 = arith.addf %37, %44 : vector<16x256xf32>
    %c241_i32 = arith.constant 241 : i32
    %46 = tpu.dynamic_rotate %1 by %c241_i32 dim 1 : vector<1x256xf32>, i32 -> vector<1x256xf32>
    %c6 = arith.constant 6 : index
    %c0_19 = arith.constant 0 : index
    %47 = vector.load %arg2[%c6, %c0_19] : memref<9x256xf32, #tpu.memory_space<vmem>>, vector<1x256xf32>
    %48 = arith.mulf %46, %47 : vector<1x256xf32>
    %c0_20 = arith.constant 0 : index
    %c6_21 = arith.constant 6 : index
    %49 = vector.load %arg3[%c0_20, %c6_21] : memref<16x9xf32, #tpu.memory_space<vmem>>, vector<16x1xf32>
    %50 = vector.broadcast %49 : vector<16x1xf32> to vector<16x256xf32>
    %51 = vector.broadcast %48 : vector<1x256xf32> to vector<16x256xf32>
    %52 = arith.mulf %50, %51 : vector<16x256xf32>
    %53 = arith.addf %45, %52 : vector<16x256xf32>
    %c240_i32 = arith.constant 240 : i32
    %54 = tpu.dynamic_rotate %1 by %c240_i32 dim 1 : vector<1x256xf32>, i32 -> vector<1x256xf32>
    %c7 = arith.constant 7 : index
    %c0_22 = arith.constant 0 : index
    %55 = vector.load %arg2[%c7, %c0_22] : memref<9x256xf32, #tpu.memory_space<vmem>>, vector<1x256xf32>
    %56 = arith.mulf %54, %55 : vector<1x256xf32>
    %c0_23 = arith.constant 0 : index
    %c7_24 = arith.constant 7 : index
    %57 = vector.load %arg3[%c0_23, %c7_24] : memref<16x9xf32, #tpu.memory_space<vmem>>, vector<16x1xf32>
    %58 = vector.broadcast %57 : vector<16x1xf32> to vector<16x256xf32>
    %59 = vector.broadcast %56 : vector<1x256xf32> to vector<16x256xf32>
    %60 = arith.mulf %58, %59 : vector<16x256xf32>
    %61 = arith.addf %53, %60 : vector<16x256xf32>
    %c239_i32 = arith.constant 239 : i32
    %62 = tpu.dynamic_rotate %1 by %c239_i32 dim 1 : vector<1x256xf32>, i32 -> vector<1x256xf32>
    %c8 = arith.constant 8 : index
    %c0_25 = arith.constant 0 : index
    %63 = vector.load %arg2[%c8, %c0_25] : memref<9x256xf32, #tpu.memory_space<vmem>>, vector<1x256xf32>
    %64 = arith.mulf %62, %63 : vector<1x256xf32>
    %c0_26 = arith.constant 0 : index
    %c8_27 = arith.constant 8 : index
    %65 = vector.load %arg3[%c0_26, %c8_27] : memref<16x9xf32, #tpu.memory_space<vmem>>, vector<16x1xf32>
    %66 = vector.broadcast %65 : vector<16x1xf32> to vector<16x256xf32>
    %67 = vector.broadcast %64 : vector<1x256xf32> to vector<16x256xf32>
    %68 = arith.mulf %66, %67 : vector<16x256xf32>
    %69 = arith.addf %61, %68 : vector<16x256xf32>
    %c0_28 = arith.constant 0 : index
    %c0_29 = arith.constant 0 : index
    %70 = vector.load %arg4[%c0_28, %c0_29] : memref<16x1xf32, #tpu.memory_space<vmem>>, vector<16x1xf32>
    %71 = vector.broadcast %70 : vector<16x1xf32> to vector<16x256xf32>
    %72 = arith.mulf %69, %71 : vector<16x256xf32>
    %c0_30 = arith.constant 0 : index
    %c0_31 = arith.constant 0 : index
    %73 = vector.load %arg5[%c0_30, %c0_31] : memref<16x1xf32, #tpu.memory_space<vmem>>, vector<16x1xf32>
    %74 = vector.broadcast %73 : vector<16x1xf32> to vector<16x256xf32>
    %75 = arith.addf %72, %74 : vector<16x256xf32>
    %cst = arith.constant 0.000000e+00 : f32
    %76 = vector.broadcast %cst : f32 to vector<16x256xf32>
    %77 = arith.maximumf %75, %76 : vector<16x256xf32>
    %c255_i32_32 = arith.constant 255 : i32
    %78 = tpu.dynamic_rotate %77 by %c255_i32_32 dim 1 : vector<16x256xf32>, i32 -> vector<16x256xf32>
    %79 = arith.maximumf %77, %78 : vector<16x256xf32>
    %c240_i32_33 = arith.constant 240 : i32
    %80 = tpu.dynamic_rotate %79 by %c240_i32_33 dim 1 : vector<16x256xf32>, i32 -> vector<16x256xf32>
    %81 = arith.maximumf %79, %80 : vector<16x256xf32>
    %c0_34 = arith.constant 0 : index
    %c4_35 = arith.constant 4 : index
    %82 = vector.load %arg7[%c0_34, %c4_35] : memref<16x9xf32, #tpu.memory_space<vmem>>, vector<16x1xf32>
    %83 = vector.broadcast %82 : vector<16x1xf32> to vector<16x256xf32>
    %84 = arith.mulf %83, %81 : vector<16x256xf32>
    %c34_i32 = arith.constant 34 : i32
    %85 = tpu.dynamic_rotate %81 by %c34_i32 dim 1 : vector<16x256xf32>, i32 -> vector<16x256xf32>
    %c0_36 = arith.constant 0 : index
    %c0_37 = arith.constant 0 : index
    %86 = vector.load %arg6[%c0_36, %c0_37] : memref<9x256xf32, #tpu.memory_space<vmem>>, vector<1x256xf32>
    %87 = vector.broadcast %86 : vector<1x256xf32> to vector<16x256xf32>
    %88 = arith.mulf %85, %87 : vector<16x256xf32>
    %c0_38 = arith.constant 0 : index
    %c0_39 = arith.constant 0 : index
    %89 = vector.load %arg7[%c0_38, %c0_39] : memref<16x9xf32, #tpu.memory_space<vmem>>, vector<16x1xf32>
    %90 = vector.broadcast %89 : vector<16x1xf32> to vector<16x256xf32>
    %91 = arith.mulf %90, %88 : vector<16x256xf32>
    %92 = arith.addf %84, %91 : vector<16x256xf32>
    %c32_i32 = arith.constant 32 : i32
    %93 = tpu.dynamic_rotate %81 by %c32_i32 dim 1 : vector<16x256xf32>, i32 -> vector<16x256xf32>
    %c1_40 = arith.constant 1 : index
    %c0_41 = arith.constant 0 : index
    %94 = vector.load %arg6[%c1_40, %c0_41] : memref<9x256xf32, #tpu.memory_space<vmem>>, vector<1x256xf32>
    %95 = vector.broadcast %94 : vector<1x256xf32> to vector<16x256xf32>
    %96 = arith.mulf %93, %95 : vector<16x256xf32>
    %c0_42 = arith.constant 0 : index
    %c1_43 = arith.constant 1 : index
    %97 = vector.load %arg7[%c0_42, %c1_43] : memref<16x9xf32, #tpu.memory_space<vmem>>, vector<16x1xf32>
    %98 = vector.broadcast %97 : vector<16x1xf32> to vector<16x256xf32>
    %99 = arith.mulf %98, %96 : vector<16x256xf32>
    %100 = arith.addf %92, %99 : vector<16x256xf32>
    %c30_i32 = arith.constant 30 : i32
    %101 = tpu.dynamic_rotate %81 by %c30_i32 dim 1 : vector<16x256xf32>, i32 -> vector<16x256xf32>
    %c2_44 = arith.constant 2 : index
    %c0_45 = arith.constant 0 : index
    %102 = vector.load %arg6[%c2_44, %c0_45] : memref<9x256xf32, #tpu.memory_space<vmem>>, vector<1x256xf32>
    %103 = vector.broadcast %102 : vector<1x256xf32> to vector<16x256xf32>
    %104 = arith.mulf %101, %103 : vector<16x256xf32>
    %c0_46 = arith.constant 0 : index
    %c2_47 = arith.constant 2 : index
    %105 = vector.load %arg7[%c0_46, %c2_47] : memref<16x9xf32, #tpu.memory_space<vmem>>, vector<16x1xf32>
    %106 = vector.broadcast %105 : vector<16x1xf32> to vector<16x256xf32>
    %107 = arith.mulf %106, %104 : vector<16x256xf32>
    %108 = arith.addf %100, %107 : vector<16x256xf32>
    %c2_i32 = arith.constant 2 : i32
    %109 = tpu.dynamic_rotate %81 by %c2_i32 dim 1 : vector<16x256xf32>, i32 -> vector<16x256xf32>
    %c3_48 = arith.constant 3 : index
    %c0_49 = arith.constant 0 : index
    %110 = vector.load %arg6[%c3_48, %c0_49] : memref<9x256xf32, #tpu.memory_space<vmem>>, vector<1x256xf32>
    %111 = vector.broadcast %110 : vector<1x256xf32> to vector<16x256xf32>
    %112 = arith.mulf %109, %111 : vector<16x256xf32>
    %c0_50 = arith.constant 0 : index
    %c3_51 = arith.constant 3 : index
    %113 = vector.load %arg7[%c0_50, %c3_51] : memref<16x9xf32, #tpu.memory_space<vmem>>, vector<16x1xf32>
    %114 = vector.broadcast %113 : vector<16x1xf32> to vector<16x256xf32>
    %115 = arith.mulf %114, %112 : vector<16x256xf32>
    %116 = arith.addf %108, %115 : vector<16x256xf32>
    %c254_i32 = arith.constant 254 : i32
    %117 = tpu.dynamic_rotate %81 by %c254_i32 dim 1 : vector<16x256xf32>, i32 -> vector<16x256xf32>
    %c5_52 = arith.constant 5 : index
    %c0_53 = arith.constant 0 : index
    %118 = vector.load %arg6[%c5_52, %c0_53] : memref<9x256xf32, #tpu.memory_space<vmem>>, vector<1x256xf32>
    %119 = vector.broadcast %118 : vector<1x256xf32> to vector<16x256xf32>
    %120 = arith.mulf %117, %119 : vector<16x256xf32>
    %c0_54 = arith.constant 0 : index
    %c5_55 = arith.constant 5 : index
    %121 = vector.load %arg7[%c0_54, %c5_55] : memref<16x9xf32, #tpu.memory_space<vmem>>, vector<16x1xf32>
    %122 = vector.broadcast %121 : vector<16x1xf32> to vector<16x256xf32>
    %123 = arith.mulf %122, %120 : vector<16x256xf32>
    %124 = arith.addf %116, %123 : vector<16x256xf32>
    %c226_i32 = arith.constant 226 : i32
    %125 = tpu.dynamic_rotate %81 by %c226_i32 dim 1 : vector<16x256xf32>, i32 -> vector<16x256xf32>
    %c6_56 = arith.constant 6 : index
    %c0_57 = arith.constant 0 : index
    %126 = vector.load %arg6[%c6_56, %c0_57] : memref<9x256xf32, #tpu.memory_space<vmem>>, vector<1x256xf32>
    %127 = vector.broadcast %126 : vector<1x256xf32> to vector<16x256xf32>
    %128 = arith.mulf %125, %127 : vector<16x256xf32>
    %c0_58 = arith.constant 0 : index
    %c6_59 = arith.constant 6 : index
    %129 = vector.load %arg7[%c0_58, %c6_59] : memref<16x9xf32, #tpu.memory_space<vmem>>, vector<16x1xf32>
    %130 = vector.broadcast %129 : vector<16x1xf32> to vector<16x256xf32>
    %131 = arith.mulf %130, %128 : vector<16x256xf32>
    %132 = arith.addf %124, %131 : vector<16x256xf32>
    %c224_i32 = arith.constant 224 : i32
    %133 = tpu.dynamic_rotate %81 by %c224_i32 dim 1 : vector<16x256xf32>, i32 -> vector<16x256xf32>
    %c7_60 = arith.constant 7 : index
    %c0_61 = arith.constant 0 : index
    %134 = vector.load %arg6[%c7_60, %c0_61] : memref<9x256xf32, #tpu.memory_space<vmem>>, vector<1x256xf32>
    %135 = vector.broadcast %134 : vector<1x256xf32> to vector<16x256xf32>
    %136 = arith.mulf %133, %135 : vector<16x256xf32>
    %c0_62 = arith.constant 0 : index
    %c7_63 = arith.constant 7 : index
    %137 = vector.load %arg7[%c0_62, %c7_63] : memref<16x9xf32, #tpu.memory_space<vmem>>, vector<16x1xf32>
    %138 = vector.broadcast %137 : vector<16x1xf32> to vector<16x256xf32>
    %139 = arith.mulf %138, %136 : vector<16x256xf32>
    %140 = arith.addf %132, %139 : vector<16x256xf32>
    %c222_i32 = arith.constant 222 : i32
    %141 = tpu.dynamic_rotate %81 by %c222_i32 dim 1 : vector<16x256xf32>, i32 -> vector<16x256xf32>
    %c8_64 = arith.constant 8 : index
    %c0_65 = arith.constant 0 : index
    %142 = vector.load %arg6[%c8_64, %c0_65] : memref<9x256xf32, #tpu.memory_space<vmem>>, vector<1x256xf32>
    %143 = vector.broadcast %142 : vector<1x256xf32> to vector<16x256xf32>
    %144 = arith.mulf %141, %143 : vector<16x256xf32>
    %c0_66 = arith.constant 0 : index
    %c8_67 = arith.constant 8 : index
    %145 = vector.load %arg7[%c0_66, %c8_67] : memref<16x9xf32, #tpu.memory_space<vmem>>, vector<16x1xf32>
    %146 = vector.broadcast %145 : vector<16x1xf32> to vector<16x256xf32>
    %147 = arith.mulf %146, %144 : vector<16x256xf32>
    %148 = arith.addf %140, %147 : vector<16x256xf32>
    %c0_68 = arith.constant 0 : index
    %c0_69 = arith.constant 0 : index
    %149 = vector.load %arg8[%c0_68, %c0_69] : memref<16x1xf32, #tpu.memory_space<vmem>>, vector<16x1xf32>
    %150 = vector.broadcast %149 : vector<16x1xf32> to vector<16x256xf32>
    %151 = arith.mulf %148, %150 : vector<16x256xf32>
    %c0_70 = arith.constant 0 : index
    %c0_71 = arith.constant 0 : index
    %152 = vector.load %arg9[%c0_70, %c0_71] : memref<16x1xf32, #tpu.memory_space<vmem>>, vector<16x1xf32>
    %153 = vector.broadcast %152 : vector<16x1xf32> to vector<16x256xf32>
    %154 = arith.addf %151, %153 : vector<16x256xf32>
    %cst_72 = arith.constant 0.000000e+00 : f32
    %155 = vector.broadcast %cst_72 : f32 to vector<16x256xf32>
    %156 = arith.maximumf %154, %155 : vector<16x256xf32>
    %c0_73 = arith.constant 0 : index
    %c0_74 = arith.constant 0 : index
    %157 = vector.load %arg10[%c0_73, %c0_74] : memref<32x16xf32, #tpu.memory_space<vmem>>, vector<32x16xf32>
    %cst_75 = arith.constant dense<0.000000e+00> : vector<32x256xf32>
    %158 = tpu.matmul %157, %156, %cst_75 {dimension_numbers = #tpu.dot_dimension_numbers<[1], [0], [0], [1], [0, 0, 1, 1], [], []>} : vector<32x16xf32>, vector<16x256xf32>, vector<32x256xf32> -> vector<32x256xf32>
    %c0_76 = arith.constant 0 : index
    %c0_77 = arith.constant 0 : index
    %159 = vector.load %arg11[%c0_76, %c0_77] : memref<32x1xf32, #tpu.memory_space<vmem>>, vector<32x1xf32>
    %160 = vector.broadcast %159 : vector<32x1xf32> to vector<32x256xf32>
    %161 = arith.mulf %158, %160 : vector<32x256xf32>
    %c0_78 = arith.constant 0 : index
    %c0_79 = arith.constant 0 : index
    %162 = vector.load %arg12[%c0_78, %c0_79] : memref<32x1xf32, #tpu.memory_space<vmem>>, vector<32x1xf32>
    %163 = vector.broadcast %162 : vector<32x1xf32> to vector<32x256xf32>
    %164 = arith.addf %161, %163 : vector<32x256xf32>
    %cst_80 = arith.constant 0.000000e+00 : f32
    %165 = vector.broadcast %cst_80 : f32 to vector<32x256xf32>
    %166 = arith.maximumf %164, %165 : vector<32x256xf32>
    %c0_81 = arith.constant 0 : index
    %c0_82 = arith.constant 0 : index
    %167 = vector.load %arg13[%c0_81, %c0_82] : memref<256x64xf32, #tpu.memory_space<vmem>>, vector<256x64xf32>
    %cst_83 = arith.constant dense<0.000000e+00> : vector<32x64xf32>
    %168 = tpu.matmul %166, %167, %cst_83 {dimension_numbers = #tpu.dot_dimension_numbers<[1], [0], [0], [1], [0, 0, 1, 1], [], []>} : vector<32x256xf32>, vector<256x64xf32>, vector<32x64xf32> -> vector<32x64xf32>
    %169 = vector.extract_strided_slice %168 {offsets = [0, 0], sizes = [32, 16], strides = [1, 1]} : vector<32x64xf32> to vector<32x16xf32>
    %170 = vector.extract_strided_slice %168 {offsets = [0, 16], sizes = [32, 16], strides = [1, 1]} : vector<32x64xf32> to vector<32x16xf32>
    %171 = arith.maximumf %169, %170 : vector<32x16xf32>
    %172 = vector.extract_strided_slice %168 {offsets = [0, 32], sizes = [32, 16], strides = [1, 1]} : vector<32x64xf32> to vector<32x16xf32>
    %173 = arith.maximumf %171, %172 : vector<32x16xf32>
    %174 = vector.extract_strided_slice %168 {offsets = [0, 48], sizes = [32, 16], strides = [1, 1]} : vector<32x64xf32> to vector<32x16xf32>
    %175 = arith.maximumf %173, %174 : vector<32x16xf32>
    %c0_84 = arith.constant 0 : index
    %c0_85 = arith.constant 0 : index
    %176 = vector.load %arg14[%c0_84, %c0_85] : memref<16x512xf32, #tpu.memory_space<vmem>>, vector<16x512xf32>
    %cst_86 = arith.constant dense<0.000000e+00> : vector<32x512xf32>
    %177 = tpu.matmul %175, %176, %cst_86 {dimension_numbers = #tpu.dot_dimension_numbers<[1], [0], [0], [1], [0, 0, 1, 1], [], []>} : vector<32x16xf32>, vector<16x512xf32>, vector<32x512xf32> -> vector<32x512xf32>
    %c0_87 = arith.constant 0 : index
    %c0_88 = arith.constant 0 : index
    %178 = vector.load %arg15[%c0_87, %c0_88] : memref<32x512xf32, #tpu.memory_space<vmem>>, vector<32x512xf32>
    %179 = arith.mulf %177, %178 : vector<32x512xf32>
    %c0_89 = arith.constant 0 : index
    %c0_90 = arith.constant 0 : index
    %180 = vector.load %arg16[%c0_89, %c0_90] : memref<512x64xf32, #tpu.memory_space<vmem>>, vector<512x64xf32>
    %cst_91 = arith.constant dense<0.000000e+00> : vector<32x64xf32>
    %181 = tpu.matmul %179, %180, %cst_91 {dimension_numbers = #tpu.dot_dimension_numbers<[1], [0], [0], [1], [0, 0, 1, 1], [], []>} : vector<32x512xf32>, vector<512x64xf32>, vector<32x64xf32> -> vector<32x64xf32>
    %cst_92 = arith.constant dense<0.000000e+00> : vector<64xf32>
    %182 = vector.multi_reduction <add>, %181, %cst_92 [0] : vector<32x64xf32> to vector<64xf32>
    %183 = vector.shape_cast %182 : vector<64xf32> to vector<1x64xf32>
    %c0_93 = arith.constant 0 : index
    %c0_94 = arith.constant 0 : index
    %184 = vector.load %arg17[%c0_93, %c0_94] : memref<1x64xf32, #tpu.memory_space<vmem>>, vector<1x64xf32>
    %185 = arith.addf %183, %184 : vector<1x64xf32>
    %cst_95 = arith.constant 0.000000e+00 : f32
    %186 = vector.broadcast %cst_95 : f32 to vector<1x64xf32>
    %187 = arith.maximumf %185, %186 : vector<1x64xf32>
    %c0_96 = arith.constant 0 : index
    %c0_97 = arith.constant 0 : index
    %188 = vector.load %arg18[%c0_96, %c0_97] : memref<64x128xf32, #tpu.memory_space<vmem>>, vector<64x128xf32>
    %cst_98 = arith.constant dense<0.000000e+00> : vector<1x128xf32>
    %189 = tpu.matmul %187, %188, %cst_98 {dimension_numbers = #tpu.dot_dimension_numbers<[1], [0], [0], [1], [0, 0, 1, 1], [], []>} : vector<1x64xf32>, vector<64x128xf32>, vector<1x128xf32> -> vector<1x128xf32>
    %c0_99 = arith.constant 0 : index
    %c0_100 = arith.constant 0 : index
    %190 = vector.load %arg19[%c0_99, %c0_100] : memref<1x128xf32, #tpu.memory_space<vmem>>, vector<1x128xf32>
    %191 = arith.addf %189, %190 : vector<1x128xf32>
    %c0_101 = arith.constant 0 : index
    %c0_102 = arith.constant 0 : index
    %c0_103 = arith.constant 0 : index
    %192 = vector.load %arg20[%c0_101, %c0_102, %c0_103] : memref<1x1x128xf32, #tpu.memory_space<vmem>>, vector<1x1x128xf32>
    %193 = vector.shape_cast %192 : vector<1x1x128xf32> to vector<1x128xf32>
    %194 = vector.shape_cast %191 : vector<1x128xf32> to vector<1x1x128xf32>
    tpu.vector_store %arg20[%c0_101, %c0_102, %c0_103], %194 {strides = array<i32>} : memref<1x1x128xf32, #tpu.memory_space<vmem>>, vector<1x1x128xf32>,
    return
  }
  func.func @transform_0(%arg0: i32) -> (i32, i32, i32) {
    %c0_i32 = arith.constant 0 : i32
    %c0_i32_0 = arith.constant 0 : i32
    %c0_i32_1 = arith.constant 0 : i32
    return %arg0, %c0_i32, %c0_i32_0 : i32, i32, i32
  }
  func.func @transform_1(%arg0: i32) -> (i32, i32) {
    %c0_i32 = arith.constant 0 : i32
    %c0_i32_0 = arith.constant 0 : i32
    %c0_i32_1 = arith.constant 0 : i32
    return %c0_i32, %c0_i32_0 : i32, i32
  }
  func.func @transform_2(%arg0: i32) -> (i32, i32) {
    %c0_i32 = arith.constant 0 : i32
    %c0_i32_0 = arith.constant 0 : i32
    %c0_i32_1 = arith.constant 0 : i32
    return %c0_i32, %c0_i32_0 : i32, i32
  }
  func.func @transform_3(%arg0: i32) -> (i32, i32) {
    %c0_i32 = arith.constant 0 : i32
    %c0_i32_0 = arith.constant 0 : i32
    %c0_i32_1 = arith.constant 0 : i32
    return %c0_i32, %c0_i32_0 : i32, i32
  }
  func.func @transform_4(%arg0: i32) -> (i32, i32) {
    %c0_i32 = arith.constant 0 : i32
    %c0_i32_0 = arith.constant 0 : i32
    %c0_i32_1 = arith.constant 0 : i32
    return %c0_i32, %c0_i32_0 : i32, i32
  }
  func.func @transform_5(%arg0: i32) -> (i32, i32) {
    %c0_i32 = arith.constant 0 : i32
    %c0_i32_0 = arith.constant 0 : i32
    %c0_i32_1 = arith.constant 0 : i32
    return %c0_i32, %c0_i32_0 : i32, i32
  }
  func.func @transform_6(%arg0: i32) -> (i32, i32) {
    %c0_i32 = arith.constant 0 : i32
    %c0_i32_0 = arith.constant 0 : i32
    %c0_i32_1 = arith.constant 0 : i32
    return %c0_i32, %c0_i32_0 : i32, i32
  }
  func.func @transform_7(%arg0: i32) -> (i32, i32) {
    %c0_i32 = arith.constant 0 : i32
    %c0_i32_0 = arith.constant 0 : i32
    %c0_i32_1 = arith.constant 0 : i32
    return %c0_i32, %c0_i32_0 : i32, i32
  }
  func.func @transform_8(%arg0: i32) -> (i32, i32) {
    %c0_i32 = arith.constant 0 : i32
    %c0_i32_0 = arith.constant 0 : i32
    %c0_i32_1 = arith.constant 0 : i32
    return %c0_i32, %c0_i32_0 : i32, i32
  }
  func.func @transform_9(%arg0: i32) -> (i32, i32) {
    %c0_i32 = arith.constant 0 : i32
    %c0_i32_0 = arith.constant 0 : i32
    %c0_i32_1 = arith.constant 0 : i32
    return %c0_i32, %c0_i32_0 : i32, i32
  }
  func.func @transform_10(%arg0: i32) -> (i32, i32) {
    %c0_i32 = arith.constant 0 : i32
    %c0_i32_0 = arith.constant 0 : i32
    %c0_i32_1 = arith.constant 0 : i32
    return %c0_i32, %c0_i32_0 : i32, i32
  }
  func.func @transform_11(%arg0: i32) -> (i32, i32) {
    %c0_i32 = arith.constant 0 : i32
    %c0_i32_0 = arith.constant 0 : i32
    %c0_i32_1 = arith.constant 0 : i32
    return %c0_i32, %c0_i32_0 : i32, i32
  }
  func.func @transform_12(%arg0: i32) -> (i32, i32) {
    %c0_i32 = arith.constant 0 : i32
    %c0_i32_0 = arith.constant 0 : i32
    %c0_i32_1 = arith.constant 0 : i32
    return %c0_i32, %c0_i32_0 : i32, i32
  }
  func.func @transform_13(%arg0: i32) -> (i32, i32) {
    %c0_i32 = arith.constant 0 : i32
    %c0_i32_0 = arith.constant 0 : i32
    %c0_i32_1 = arith.constant 0 : i32
    return %c0_i32, %c0_i32_0 : i32, i32
  }
  func.func @transform_14(%arg0: i32) -> (i32, i32) {
    %c0_i32 = arith.constant 0 : i32
    %c0_i32_0 = arith.constant 0 : i32
    %c0_i32_1 = arith.constant 0 : i32
    return %c0_i32, %c0_i32_0 : i32, i32
  }
  func.func @transform_15(%arg0: i32) -> (i32, i32) {
    %c0_i32 = arith.constant 0 : i32
    %c0_i32_0 = arith.constant 0 : i32
    %c0_i32_1 = arith.constant 0 : i32
    return %c0_i32, %c0_i32_0 : i32, i32
  }
  func.func @transform_16(%arg0: i32) -> (i32, i32) {
    %c0_i32 = arith.constant 0 : i32
    %c0_i32_0 = arith.constant 0 : i32
    %c0_i32_1 = arith.constant 0 : i32
    return %c0_i32, %c0_i32_0 : i32, i32
  }
  func.func @transform_17(%arg0: i32) -> (i32, i32) {
    %c0_i32 = arith.constant 0 : i32
    %c0_i32_0 = arith.constant 0 : i32
    %c0_i32_1 = arith.constant 0 : i32
    return %c0_i32, %c0_i32_0 : i32, i32
  }
  func.func @transform_18(%arg0: i32) -> (i32, i32) {
    %c0_i32 = arith.constant 0 : i32
    %c0_i32_0 = arith.constant 0 : i32
    %c0_i32_1 = arith.constant 0 : i32
    return %c0_i32, %c0_i32_0 : i32, i32
  }
  func.func @transform_19(%arg0: i32) -> (i32, i32, i32) {
    %c0_i32 = arith.constant 0 : i32
    %c0_i32_0 = arith.constant 0 : i32
    %c0_i32_1 = arith.constant 0 : i32
    return %arg0, %c0_i32, %c0_i32_0 : i32, i32, i32
  }
}

</mosaic_0001>

<llo_original>
// kernel: tpu_custom_call.1
$region0: #{tpu_custom_call.1}
  #allocation0 [shape = 'u32[]', space=smem, size = 0x4, offset = 0x4, fixed_abs, tag = 'smem constant byte address 0x4 - core index']
  #allocation1 [shape = 'u32[144,128]{1,0:T(1,128)}', space=vmem, size = 0x12000, scoped, tag = 'internal scratch']
  %s0 = inlined_call_operand.vmem [shape: f32[2,1,256], index: 0, kind: input, shape index: {}]
  %s1 = inlined_call_operand.vmem [shape: f32[9,256], index: 1, kind: input, shape index: {}]
  %s2 = inlined_call_operand.vmem [shape: f32[16,9], index: 2, kind: input, shape index: {}]
  %s3 = inlined_call_operand.vmem [shape: f32[16,1], index: 3, kind: input, shape index: {}]
  %s4 = inlined_call_operand.vmem [shape: f32[16,1], index: 4, kind: input, shape index: {}]
  %s5 = inlined_call_operand.vmem [shape: f32[9,256], index: 5, kind: input, shape index: {}]
  %s6 = inlined_call_operand.vmem [shape: f32[16,9], index: 6, kind: input, shape index: {}]
  %s7 = inlined_call_operand.vmem [shape: f32[16,1], index: 7, kind: input, shape index: {}]
  %s8 = inlined_call_operand.vmem [shape: f32[16,1], index: 8, kind: input, shape index: {}]
  %s9 = inlined_call_operand.vmem [shape: f32[32,16], index: 9, kind: input, shape index: {}]
  %s10 = inlined_call_operand.vmem [shape: f32[32,1], index: 10, kind: input, shape index: {}]
  %s11 = inlined_call_operand.vmem [shape: f32[32,1], index: 11, kind: input, shape index: {}]
  %s12 = inlined_call_operand.vmem [shape: f32[256,64], index: 12, kind: input, shape index: {}]
  %s13 = inlined_call_operand.vmem [shape: f32[16,512], index: 13, kind: input, shape index: {}]
  %s14 = inlined_call_operand.vmem [shape: f32[32,512], index: 14, kind: input, shape index: {}]
  %s15 = inlined_call_operand.vmem [shape: f32[512,64], index: 15, kind: input, shape index: {}]
  %s16 = inlined_call_operand.vmem [shape: f32[1,64], index: 16, kind: input, shape index: {}]
  %s17 = inlined_call_operand.vmem [shape: f32[64,128], index: 17, kind: input, shape index: {}]
  %s18 = inlined_call_operand.vmem [shape: f32[1,128], index: 18, kind: input, shape index: {}]
  %s19 = inlined_call_operand.hbm [shape: f32[2,1,128], index: 19, kind: output, shape index: {}]
  %s20 = sld [smem:[#allocation0]]
  $region109: #{tpu_custom_call.1} parent=0
    _
  %s22 = ssub.s32 1, %s20
  %s23 = scalar_select 0, %s22, %s20
  $region1: #{tpu_custom_call.1} parent=0
    #allocation2 [shape = 'u8[1024]{0}', space=vmem, size = 0x400, scoped, tag = 'output window, operand 0']
    #allocation3 [shape = 's32[2]{0}', space=sflag, size = 0x8, scoped, tag = 'scoped memory for tpu_custom_call.1']
    %24 = vsyncpa [#allocation3], 0
    %s25 = scalar_lea.sflag [#allocation3], 1
    %26 = vsyncpa %s25, 0
    loop: start=0, step=1, limit=4
    $region2: #{tpu_custom_call.1} parent=1 // loop_pre_header
      _
    $region3: #{tpu_custom_call.1} parent=1 // loop_header
      %s28 = sphi 0, %s32
      %p29 = scmp.ge.s32.totalorder %s28, 4
      %s38 = sphi 0, %s40
      %s41 = sphi 0, %s38
      %s42 = sphi 0, %s41
      %s58 = sphi 0, %s42
      %s62 = sphi 0, %s62
      %s64 = sphi 0, %s62
      %s65 = sphi 0, %s64
      %s79 = sphi 0, %s65
      %s83 = sphi 0, %s83
      %s85 = sphi 0, %s83
      %s86 = sphi 0, %s85
      %s100 = sphi 0, %s86
      %s104 = sphi 0, %s104
      %s106 = sphi 0, %s104
      %s107 = sphi 0, %s106
      %s121 = sphi 0, %s107
      %s125 = sphi 0, %s125
      %s127 = sphi 0, %s125
      %s128 = sphi 0, %s127
      %s142 = sphi 0, %s128
      %s146 = sphi 0, %s146
      %s148 = sphi 0, %s146
      %s149 = sphi 0, %s148
      %s163 = sphi 0, %s149
      %s167 = sphi 0, %s167
      %s169 = sphi 0, %s167
      %s170 = sphi 0, %s169
      %s184 = sphi 0, %s170
      %s188 = sphi 0, %s188
      %s190 = sphi 0, %s188
      %s191 = sphi 0, %s190
      %s205 = sphi 0, %s191
      %s209 = sphi 0, %s209
      %s211 = sphi 0, %s209
      %s212 = sphi 0, %s211
      %s226 = sphi 0, %s212
      %s230 = sphi 0, %s230
      %s232 = sphi 0, %s230
      %s233 = sphi 0, %s232
      %s247 = sphi 0, %s233
      %s251 = sphi 0, %s251
      %s253 = sphi 0, %s251
      %s254 = sphi 0, %s253
      %s268 = sphi 0, %s254
      %s272 = sphi 0, %s272
      %s274 = sphi 0, %s272
      %s275 = sphi 0, %s274
      %s289 = sphi 0, %s275
      %s293 = sphi 0, %s293
      %s295 = sphi 0, %s293
      %s296 = sphi 0, %s295
      %s310 = sphi 0, %s296
      %s314 = sphi 0, %s314
      %s316 = sphi 0, %s314
      %s317 = sphi 0, %s316
      %s331 = sphi 0, %s317
      %s335 = sphi 0, %s335
      %s337 = sphi 0, %s335
      %s338 = sphi 0, %s337
      %s352 = sphi 0, %s338
      %s356 = sphi 0, %s356
      %s358 = sphi 0, %s356
      %s359 = sphi 0, %s358
      %s373 = sphi 0, %s359
      %s377 = sphi 0, %s377
      %s379 = sphi 0, %s377
      %s380 = sphi 0, %s379
      %s394 = sphi 0, %s380
      %s398 = sphi 0, %s398
      %s400 = sphi 0, %s398
      %s401 = sphi 0, %s400
      %s415 = sphi 0, %s401
      %s419 = sphi 0, %s419
      %s421 = sphi 0, %s419
      %s422 = sphi 0, %s421
      %s436 = sphi 0, %s422
      %s442 = sphi 0, %s444
      %s445 = sphi 0, %s442
      %s446 = sphi 0, %s445
      %s462 = sphi 0, %s446
    $region4: #{tpu_custom_call.1} parent=1 // loop_header_branch
      %31 = sbr.rel (%p29) target = $region8
    $region5: #{tpu_custom_call.1} parent=1 // loop_body
      %s33 = ssub.s32 %s28, 1
      %s34 = ssub.s32 %s28, 2
      %s35 = sadd.s32 %s28, 1
      %s36 = ssub.s32 %s28, %s35
      %p37 = scmp.eq.s32.totalorder %s36, 0
      %s39 = sadd.s32 %s38, 1
      %s40 = scalar_select %p37, %s38, %s39
      %p43 = pneg %p37
      %p44 = scmp.eq.s32.totalorder %s28, 1
      %p45 = por %p43, %p44
      %p46 = scmp.ne.s32.totalorder %s38, %s41
      %p47 = scmp.eq.s32.totalorder %s28, 0
      %p48 = por %p46, %p47
      %p49 = scmp.ne.s32.totalorder %s38, %s41
      %p50 = scmp.eq.s32.totalorder %s33, 1
      %p51 = por %p49, %p50
      %p52 = scmp.ne.s32.totalorder %s41, %s42
      %p53 = scmp.eq.s32.totalorder %s33, 0
      %p54 = por %p52, %p53
      %p55 = scmp.ne.s32.totalorder %s41, %s42
      %p56 = scmp.eq.s32.totalorder %s34, 1
      %p57 = por %p55, %p56
      %p59 = scmp.ne.s32.totalorder %s42, %s58
      %p60 = scmp.eq.s32.totalorder %s34, 0
      %p61 = por %p59, %p60
      %s63 = sadd.s32 %s62, 1
      %p66 = scmp.eq.s32.totalorder %s28, 1
      %p67 = scmp.ne.s32.totalorder %s62, %s64
      %p68 = scmp.eq.s32.totalorder %s28, 0
      %p69 = por %p67, %p68
      %p70 = scmp.ne.s32.totalorder %s62, %s64
      %p71 = scmp.eq.s32.totalorder %s33, 1
      %p72 = por %p70, %p71
      %p73 = scmp.ne.s32.totalorder %s64, %s65
      %p74 = scmp.eq.s32.totalorder %s33, 0
      %p75 = por %p73, %p74
      %p76 = scmp.ne.s32.totalorder %s64, %s65
      %p77 = scmp.eq.s32.totalorder %s34, 1
      %p78 = por %p76, %p77
      %p80 = scmp.ne.s32.totalorder %s65, %s79
      %p81 = scmp.eq.s32.totalorder %s34, 0
      %p82 = por %p80, %p81
      %s84 = sadd.s32 %s83, 1
      %p87 = scmp.eq.s32.totalorder %s28, 1
      %p88 = scmp.ne.s32.totalorder %s83, %s85
      %p89 = scmp.eq.s32.totalorder %s28, 0
      %p90 = por %p88, %p89
      %p91 = scmp.ne.s32.totalorder %s83, %s85
      %p92 = scmp.eq.s32.totalorder %s33, 1
      %p93 = por %p91, %p92
      %p94 = scmp.ne.s32.totalorder %s85, %s86
      %p95 = scmp.eq.s32.totalorder %s33, 0
      %p96 = por %p94, %p95
      %p97 = scmp.ne.s32.totalorder %s85, %s86
      %p98 = scmp.eq.s32.totalorder %s34, 1
      %p99 = por %p97, %p98
      %p101 = scmp.ne.s32.totalorder %s86, %s100
      %p102 = scmp.eq.s32.totalorder %s34, 0
      %p103 = por %p101, %p102
      %s105 = sadd.s32 %s104, 1
      %p108 = scmp.eq.s32.totalorder %s28, 1
      %p109 = scmp.ne.s32.totalorder %s104, %s106
      %p110 = scmp.eq.s32.totalorder %s28, 0
      %p111 = por %p109, %p110
      %p112 = scmp.ne.s32.totalorder %s104, %s106
      %p113 = scmp.eq.s32.totalorder %s33, 1
      %p114 = por %p112, %p113
      %p115 = scmp.ne.s32.totalorder %s106, %s107
      %p116 = scmp.eq.s32.totalorder %s33, 0
      %p117 = por %p115, %p116
      %p118 = scmp.ne.s32.totalorder %s106, %s107
      %p119 = scmp.eq.s32.totalorder %s34, 1
      %p120 = por %p118, %p119
      %p122 = scmp.ne.s32.totalorder %s107, %s121
      %p123 = scmp.eq.s32.totalorder %s34, 0
      %p124 = por %p122, %p123
      %s126 = sadd.s32 %s125, 1
      %p129 = scmp.eq.s32.totalorder %s28, 1
      %p130 = scmp.ne.s32.totalorder %s125, %s127
      %p131 = scmp.eq.s32.totalorder %s28, 0
      %p132 = por %p130, %p131
      %p133 = scmp.ne.s32.totalorder %s125, %s127
      %p134 = scmp.eq.s32.totalorder %s33, 1
      %p135 = por %p133, %p134
      %p136 = scmp.ne.s32.totalorder %s127, %s128
      %p137 = scmp.eq.s32.totalorder %s33, 0
      %p138 = por %p136, %p137
      %p139 = scmp.ne.s32.totalorder %s127, %s128
      %p140 = scmp.eq.s32.totalorder %s34, 1
      %p141 = por %p139, %p140
      %p143 = scmp.ne.s32.totalorder %s128, %s142
      %p144 = scmp.eq.s32.totalorder %s34, 0
      %p145 = por %p143, %p144
      %s147 = sadd.s32 %s146, 1
      %p150 = scmp.eq.s32.totalorder %s28, 1
      %p151 = scmp.ne.s32.totalorder %s146, %s148
      %p152 = scmp.eq.s32.totalorder %s28, 0
      %p153 = por %p151, %p152
      %p154 = scmp.ne.s32.totalorder %s146, %s148
      %p155 = scmp.eq.s32.totalorder %s33, 1
      %p156 = por %p154, %p155
      %p157 = scmp.ne.s32.totalorder %s148, %s149
      %p158 = scmp.eq.s32.totalorder %s33, 0
      %p159 = por %p157, %p158
      %p160 = scmp.ne.s32.totalorder %s148, %s149
      %p161 = scmp.eq.s32.totalorder %s34, 1
      %p162 = por %p160, %p161
      %p164 = scmp.ne.s32.totalorder %s149, %s163
      %p165 = scmp.eq.s32.totalorder %s34, 0
      %p166 = por %p164, %p165
      %s168 = sadd.s32 %s167, 1
      %p171 = scmp.eq.s32.totalorder %s28, 1
      %p172 = scmp.ne.s32.totalorder %s167, %s169
      %p173 = scmp.eq.s32.totalorder %s28, 0
      %p174 = por %p172, %p173
      %p175 = scmp.ne.s32.totalorder %s167, %s169
      %p176 = scmp.eq.s32.totalorder %s33, 1
      %p177 = por %p175, %p176
      %p178 = scmp.ne.s32.totalorder %s169, %s170
      %p179 = scmp.eq.s32.totalorder %s33, 0
      %p180 = por %p178, %p179
      %p181 = scmp.ne.s32.totalorder %s169, %s170
      %p182 = scmp.eq.s32.totalorder %s34, 1
      %p183 = por %p181, %p182
      %p185 = scmp.ne.s32.totalorder %s170, %s184
      %p186 = scmp.eq.s32.totalorder %s34, 0
      %p187 = por %p185, %p186
      %s189 = sadd.s32 %s188, 1
      %p192 = scmp.eq.s32.totalorder %s28, 1
      %p193 = scmp.ne.s32.totalorder %s188, %s190
      %p194 = scmp.eq.s32.totalorder %s28, 0
      %p195 = por %p193, %p194
      %p196 = scmp.ne.s32.totalorder %s188, %s190
      %p197 = scmp.eq.s32.totalorder %s33, 1
      %p198 = por %p196, %p197
      %p199 = scmp.ne.s32.totalorder %s190, %s191
      %p200 = scmp.eq.s32.totalorder %s33, 0
      %p201 = por %p199, %p200
      %p202 = scmp.ne.s32.totalorder %s190, %s191
      %p203 = scmp.eq.s32.totalorder %s34, 1
      %p204 = por %p202, %p203
      %p206 = scmp.ne.s32.totalorder %s191, %s205
      %p207 = scmp.eq.s32.totalorder %s34, 0
      %p208 = por %p206, %p207
      %s210 = sadd.s32 %s209, 1
      %p213 = scmp.eq.s32.totalorder %s28, 1
      %p214 = scmp.ne.s32.totalorder %s209, %s211
      %p215 = scmp.eq.s32.totalorder %s28, 0
      %p216 = por %p214, %p215
      %p217 = scmp.ne.s32.totalorder %s209, %s211
      %p218 = scmp.eq.s32.totalorder %s33, 1
      %p219 = por %p217, %p218
      %p220 = scmp.ne.s32.totalorder %s211, %s212
      %p221 = scmp.eq.s32.totalorder %s33, 0
      %p222 = por %p220, %p221
      %p223 = scmp.ne.s32.totalorder %s211, %s212
      %p224 = scmp.eq.s32.totalorder %s34, 1
      %p225 = por %p223, %p224
      %p227 = scmp.ne.s32.totalorder %s212, %s226
      %p228 = scmp.eq.s32.totalorder %s34, 0
      %p229 = por %p227, %p228
      %s231 = sadd.s32 %s230, 1
      %p234 = scmp.eq.s32.totalorder %s28, 1
      %p235 = scmp.ne.s32.totalorder %s230, %s232
      %p236 = scmp.eq.s32.totalorder %s28, 0
      %p237 = por %p235, %p236
      %p238 = scmp.ne.s32.totalorder %s230, %s232
      %p239 = scmp.eq.s32.totalorder %s33, 1
      %p240 = por %p238, %p239
      %p241 = scmp.ne.s32.totalorder %s232, %s233
      %p242 = scmp.eq.s32.totalorder %s33, 0
      %p243 = por %p241, %p242
      %p244 = scmp.ne.s32.totalorder %s232, %s233
      %p245 = scmp.eq.s32.totalorder %s34, 1
      %p246 = por %p244, %p245
      %p248 = scmp.ne.s32.totalorder %s233, %s247
      %p249 = scmp.eq.s32.totalorder %s34, 0
      %p250 = por %p248, %p249
      %s252 = sadd.s32 %s251, 1
      %p255 = scmp.eq.s32.totalorder %s28, 1
      %p256 = scmp.ne.s32.totalorder %s251, %s253
      %p257 = scmp.eq.s32.totalorder %s28, 0
      %p258 = por %p256, %p257
      %p259 = scmp.ne.s32.totalorder %s251, %s253
      %p260 = scmp.eq.s32.totalorder %s33, 1
      %p261 = por %p259, %p260
      %p262 = scmp.ne.s32.totalorder %s253, %s254
      %p263 = scmp.eq.s32.totalorder %s33, 0
      %p264 = por %p262, %p263
      %p265 = scmp.ne.s32.totalorder %s253, %s254
      %p266 = scmp.eq.s32.totalorder %s34, 1
      %p267 = por %p265, %p266
      %p269 = scmp.ne.s32.totalorder %s254, %s268
      %p270 = scmp.eq.s32.totalorder %s34, 0
      %p271 = por %p269, %p270
      %s273 = sadd.s32 %s272, 1
      %p276 = scmp.eq.s32.totalorder %s28, 1
      %p277 = scmp.ne.s32.totalorder %s272, %s274
      %p278 = scmp.eq.s32.totalorder %s28, 0
      %p279 = por %p277, %p278
      %p280 = scmp.ne.s32.totalorder %s272, %s274
      %p281 = scmp.eq.s32.totalorder %s33, 1
      %p282 = por %p280, %p281
      %p283 = scmp.ne.s32.totalorder %s274, %s275
      %p284 = scmp.eq.s32.totalorder %s33, 0
      %p285 = por %p283, %p284
      %p286 = scmp.ne.s32.totalorder %s274, %s275
      %p287 = scmp.eq.s32.totalorder %s34, 1
      %p288 = por %p286, %p287
      %p290 = scmp.ne.s32.totalorder %s275, %s289
      %p291 = scmp.eq.s32.totalorder %s34, 0
      %p292 = por %p290, %p291
      %s294 = sadd.s32 %s293, 1
      %p297 = scmp.eq.s32.totalorder %s28, 1
      %p298 = scmp.ne.s32.totalorder %s293, %s295
      %p299 = scmp.eq.s32.totalorder %s28, 0
      %p300 = por %p298, %p299
      %p301 = scmp.ne.s32.totalorder %s293, %s295
      %p302 = scmp.eq.s32.totalorder %s33, 1
      %p303 = por %p301, %p302
      %p304 = scmp.ne.s32.totalorder %s295, %s296
      %p305 = scmp.eq.s32.totalorder %s33, 0
      %p306 = por %p304, %p305
      %p307 = scmp.ne.s32.totalorder %s295, %s296
      %p308 = scmp.eq.s32.totalorder %s34, 1
      %p309 = por %p307, %p308
      %p311 = scmp.ne.s32.totalorder %s296, %s310
      %p312 = scmp.eq.s32.totalorder %s34, 0
      %p313 = por %p311, %p312
      %s315 = sadd.s32 %s314, 1
      %p318 = scmp.eq.s32.totalorder %s28, 1
      %p319 = scmp.ne.s32.totalorder %s314, %s316
      %p320 = scmp.eq.s32.totalorder %s28, 0
      %p321 = por %p319, %p320
      %p322 = scmp.ne.s32.totalorder %s314, %s316
      %p323 = scmp.eq.s32.totalorder %s33, 1
      %p324 = por %p322, %p323
      %p325 = scmp.ne.s32.totalorder %s316, %s317
      %p326 = scmp.eq.s32.totalorder %s33, 0
      %p327 = por %p325, %p326
      %p328 = scmp.ne.s32.totalorder %s316, %s317
      %p329 = scmp.eq.s32.totalorder %s34, 1
      %p330 = por %p328, %p329
      %p332 = scmp.ne.s32.totalorder %s317, %s331
      %p333 = scmp.eq.s32.totalorder %s34, 0
      %p334 = por %p332, %p333
      %s336 = sadd.s32 %s335, 1
      %p339 = scmp.eq.s32.totalorder %s28, 1
      %p340 = scmp.ne.s32.totalorder %s335, %s337
      %p341 = scmp.eq.s32.totalorder %s28, 0
      %p342 = por %p340, %p341
      %p343 = scmp.ne.s32.totalorder %s335, %s337
      %p344 = scmp.eq.s32.totalorder %s33, 1
      %p345 = por %p343, %p344
      %p346 = scmp.ne.s32.totalorder %s337, %s338
      %p347 = scmp.eq.s32.totalorder %s33, 0
      %p348 = por %p346, %p347
      %p349 = scmp.ne.s32.totalorder %s337, %s338
      %p350 = scmp.eq.s32.totalorder %s34, 1
      %p351 = por %p349, %p350
      %p353 = scmp.ne.s32.totalorder %s338, %s352
      %p354 = scmp.eq.s32.totalorder %s34, 0
      %p355 = por %p353, %p354
      %s357 = sadd.s32 %s356, 1
      %p360 = scmp.eq.s32.totalorder %s28, 1
      %p361 = scmp.ne.s32.totalorder %s356, %s358
      %p362 = scmp.eq.s32.totalorder %s28, 0
      %p363 = por %p361, %p362
      %p364 = scmp.ne.s32.totalorder %s356, %s358
      %p365 = scmp.eq.s32.totalorder %s33, 1
      %p366 = por %p364, %p365
      %p367 = scmp.ne.s32.totalorder %s358, %s359
      %p368 = scmp.eq.s32.totalorder %s33, 0
      %p369 = por %p367, %p368
      %p370 = scmp.ne.s32.totalorder %s358, %s359
      %p371 = scmp.eq.s32.totalorder %s34, 1
      %p372 = por %p370, %p371
      %p374 = scmp.ne.s32.totalorder %s359, %s373
      %p375 = scmp.eq.s32.totalorder %s34, 0
      %p376 = por %p374, %p375
      %s378 = sadd.s32 %s377, 1
      %p381 = scmp.eq.s32.totalorder %s28, 1
      %p382 = scmp.ne.s32.totalorder %s377, %s379
      %p383 = scmp.eq.s32.totalorder %s28, 0
      %p384 = por %p382, %p383
      %p385 = scmp.ne.s32.totalorder %s377, %s379
      %p386 = scmp.eq.s32.totalorder %s33, 1
      %p387 = por %p385, %p386
      %p388 = scmp.ne.s32.totalorder %s379, %s380
      %p389 = scmp.eq.s32.totalorder %s33, 0
      %p390 = por %p388, %p389
      %p391 = scmp.ne.s32.totalorder %s379, %s380
      %p392 = scmp.eq.s32.totalorder %s34, 1
      %p393 = por %p391, %p392
      %p395 = scmp.ne.s32.totalorder %s380, %s394
      %p396 = scmp.eq.s32.totalorder %s34, 0
      %p397 = por %p395, %p396
      %s399 = sadd.s32 %s398, 1
      %p402 = scmp.eq.s32.totalorder %s28, 1
      %p403 = scmp.ne.s32.totalorder %s398, %s400
      %p404 = scmp.eq.s32.totalorder %s28, 0
      %p405 = por %p403, %p404
      %p406 = scmp.ne.s32.totalorder %s398, %s400
      %p407 = scmp.eq.s32.totalorder %s33, 1
      %p408 = por %p406, %p407
      %p409 = scmp.ne.s32.totalorder %s400, %s401
      %p410 = scmp.eq.s32.totalorder %s33, 0
      %p411 = por %p409, %p410
      %p412 = scmp.ne.s32.totalorder %s400, %s401
      %p413 = scmp.eq.s32.totalorder %s34, 1
      %p414 = por %p412, %p413
      %p416 = scmp.ne.s32.totalorder %s401, %s415
      %p417 = scmp.eq.s32.totalorder %s34, 0
      %p418 = por %p416, %p417
      %s420 = sadd.s32 %s419, 1
      %p423 = scmp.eq.s32.totalorder %s28, 1
      %p424 = scmp.ne.s32.totalorder %s419, %s421
      %p425 = scmp.eq.s32.totalorder %s28, 0
      %p426 = por %p424, %p425
      %p427 = scmp.ne.s32.totalorder %s419, %s421
      %p428 = scmp.eq.s32.totalorder %s33, 1
      %p429 = por %p427, %p428
      %p430 = scmp.ne.s32.totalorder %s421, %s422
      %p431 = scmp.eq.s32.totalorder %s33, 0
      %p432 = por %p430, %p431
      %p433 = scmp.ne.s32.totalorder %s421, %s422
      %p434 = scmp.eq.s32.totalorder %s34, 1
      %p435 = por %p433, %p434
      %p437 = scmp.ne.s32.totalorder %s422, %s436
      %p438 = scmp.eq.s32.totalorder %s34, 0
      %p439 = por %p437, %p438
      %s440 = ssub.s32 %s28, %s35
      %p441 = scmp.eq.s32.totalorder %s440, 0
      %s443 = sadd.s32 %s442, 1
      %s444 = scalar_select %p441, %s442, %s443
      %p447 = pneg %p441
      %p448 = scmp.eq.s32.totalorder %s28, 1
      %p449 = por %p447, %p448
      %p450 = scmp.ne.s32.totalorder %s442, %s445
      %p451 = scmp.eq.s32.totalorder %s28, 0
      %p452 = por %p450, %p451
      %p453 = scmp.ne.s32.totalorder %s442, %s445
      %p454 = scmp.eq.s32.totalorder %s33, 1
      %p455 = por %p453, %p454
      %p456 = scmp.ne.s32.totalorder %s445, %s446
      %p457 = scmp.eq.s32.totalorder %s33, 0
      %p458 = por %p456, %p457
      %p459 = scmp.ne.s32.totalorder %s445, %s446
      %p460 = scmp.eq.s32.totalorder %s34, 1
      %p461 = por %p459, %p460
      %p463 = scmp.ne.s32.totalorder %s446, %s462
      %p464 = scmp.eq.s32.totalorder %s34, 0
      %p465 = por %p463, %p464
      %p466 = scmp.le.s32.totalorder 1, %s28
      %p467 = scmp.lt.s32.totalorder %s28, 3
      %p468 = pnand %p466, %p467
      %p469 = pneg %p468
      // Predicated region
      $region9: #{tpu_custom_call.1} parent=5 // pred_check
        _
      $region10: #{tpu_custom_call.1} parent=5 // pred_check_branch
        %471 = sbr.rel (%p468) target = $region12
      $region11: #{tpu_custom_call.1} parent=5 // pred_region
        %s472 = ssub.s32 %s28, 1
        // Predicated region
        $region13: #{tpu_custom_call.1} parent=11 // pred_check
          %p473 = pneg %p75
        $region14: #{tpu_custom_call.1} parent=11 // pred_check_branch
          %475 = sbr.rel (%p473) target = $region16
        $region15: #{tpu_custom_call.1} parent=11 // pred_region
          _
        $region16: #{tpu_custom_call.1} parent=11 // pred_fallthru
          _
        // Predicated region
        $region17: #{tpu_custom_call.1} parent=11 // pred_check
          %p476 = pneg %p96
        $region18: #{tpu_custom_call.1} parent=11 // pred_check_branch
          %478 = sbr.rel (%p476) target = $region20
        $region19: #{tpu_custom_call.1} parent=11 // pred_region
          _
        $region20: #{tpu_custom_call.1} parent=11 // pred_fallthru
          _
        // Predicated region
        $region21: #{tpu_custom_call.1} parent=11 // pred_check
          %p479 = pneg %p117
        $region22: #{tpu_custom_call.1} parent=11 // pred_check_branch
          %481 = sbr.rel (%p479) target = $region24
        $region23: #{tpu_custom_call.1} parent=11 // pred_region
          _
        $region24: #{tpu_custom_call.1} parent=11 // pred_fallthru
          _
        // Predicated region
        $region25: #{tpu_custom_call.1} parent=11 // pred_check
          %p482 = pneg %p138
        $region26: #{tpu_custom_call.1} parent=11 // pred_check_branch
          %484 = sbr.rel (%p482) target = $region28
        $region27: #{tpu_custom_call.1} parent=11 // pred_region
          _
        $region28: #{tpu_custom_call.1} parent=11 // pred_fallthru
          _
        // Predicated region
        $region29: #{tpu_custom_call.1} parent=11 // pred_check
          %p485 = pneg %p159
        $region30: #{tpu_custom_call.1} parent=11 // pred_check_branch
          %487 = sbr.rel (%p485) target = $region32
        $region31: #{tpu_custom_call.1} parent=11 // pred_region
          _
        $region32: #{tpu_custom_call.1} parent=11 // pred_fallthru
          _
        // Predicated region
        $region33: #{tpu_custom_call.1} parent=11 // pred_check
          %p488 = pneg %p180
        $region34: #{tpu_custom_call.1} parent=11 // pred_check_branch
          %490 = sbr.rel (%p488) target = $region36
        $region35: #{tpu_custom_call.1} parent=11 // pred_region
          _
        $region36: #{tpu_custom_call.1} parent=11 // pred_fallthru
          _
        // Predicated region
        $region37: #{tpu_custom_call.1} parent=11 // pred_check
          %p491 = pneg %p201
        $region38: #{tpu_custom_call.1} parent=11 // pred_check_branch
          %493 = sbr.rel (%p491) target = $region40
        $region39: #{tpu_custom_call.1} parent=11 // pred_region
          _
        $region40: #{tpu_custom_call.1} parent=11 // pred_fallthru
          _
        // Predicated region
        $region41: #{tpu_custom_call.1} parent=11 // pred_check
          %p494 = pneg %p222
        $region42: #{tpu_custom_call.1} parent=11 // pred_check_branch
          %496 = sbr.rel (%p494) target = $region44
        $region43: #{tpu_custom_call.1} parent=11 // pred_region
          _
        $region44: #{tpu_custom_call.1} parent=11 // pred_fallthru
          _
        // Predicated region
        $region45: #{tpu_custom_call.1} parent=11 // pred_check
          %p497 = pneg %p243
        $region46: #{tpu_custom_call.1} parent=11 // pred_check_branch
          %499 = sbr.rel (%p497) target = $region48
        $region47: #{tpu_custom_call.1} parent=11 // pred_region
          _
        $region48: #{tpu_custom_call.1} parent=11 // pred_fallthru
          _
        // Predicated region
        $region49: #{tpu_custom_call.1} parent=11 // pred_check
          %p500 = pneg %p264
        $region50: #{tpu_custom_call.1} parent=11 // pred_check_branch
          %502 = sbr.rel (%p500) target = $region52
        $region51: #{tpu_custom_call.1} parent=11 // pred_region
          _
        $region52: #{tpu_custom_call.1} parent=11 // pred_fallthru
          _
        // Predicated region
        $region53: #{tpu_custom_call.1} parent=11 // pred_check
          %p503 = pneg %p285
        $region54: #{tpu_custom_call.1} parent=11 // pred_check_branch
          %505 = sbr.rel (%p503) target = $region56
        $region55: #{tpu_custom_call.1} parent=11 // pred_region
          _
        $region56: #{tpu_custom_call.1} parent=11 // pred_fallthru
          _
        // Predicated region
        $region57: #{tpu_custom_call.1} parent=11 // pred_check
          %p506 = pneg %p306
        $region58: #{tpu_custom_call.1} parent=11 // pred_check_branch
          %508 = sbr.rel (%p506) target = $region60
        $region59: #{tpu_custom_call.1} parent=11 // pred_region
          _
        $region60: #{tpu_custom_call.1} parent=11 // pred_fallthru
          _
        // Predicated region
        $region61: #{tpu_custom_call.1} parent=11 // pred_check
          %p509 = pneg %p327
        $region62: #{tpu_custom_call.1} parent=11 // pred_check_branch
          %511 = sbr.rel (%p509) target = $region64
        $region63: #{tpu_custom_call.1} parent=11 // pred_region
          _
        $region64: #{tpu_custom_call.1} parent=11 // pred_fallthru
          _
        // Predicated region
        $region65: #{tpu_custom_call.1} parent=11 // pred_check
          %p512 = pneg %p348
        $region66: #{tpu_custom_call.1} parent=11 // pred_check_branch
          %514 = sbr.rel (%p512) target = $region68
        $region67: #{tpu_custom_call.1} parent=11 // pred_region
          _
        $region68: #{tpu_custom_call.1} parent=11 // pred_fallthru
          _
        // Predicated region
        $region69: #{tpu_custom_call.1} parent=11 // pred_check
          %p515 = pneg %p369
        $region70: #{tpu_custom_call.1} parent=11 // pred_check_branch
          %517 = sbr.rel (%p515) target = $region72
        $region71: #{tpu_custom_call.1} parent=11 // pred_region
          _
        $region72: #{tpu_custom_call.1} parent=11 // pred_fallthru
          _
        // Predicated region
        $region73: #{tpu_custom_call.1} parent=11 // pred_check
          %p518 = pneg %p390
        $region74: #{tpu_custom_call.1} parent=11 // pred_check_branch
          %520 = sbr.rel (%p518) target = $region76
        $region75: #{tpu_custom_call.1} parent=11 // pred_region
          _
        $region76: #{tpu_custom_call.1} parent=11 // pred_fallthru
          _
        // Predicated region
        $region77: #{tpu_custom_call.1} parent=11 // pred_check
          %p521 = pneg %p411
        $region78: #{tpu_custom_call.1} parent=11 // pred_check_branch
          %523 = sbr.rel (%p521) target = $region80
        $region79: #{tpu_custom_call.1} parent=11 // pred_region
          _
        $region80: #{tpu_custom_call.1} parent=11 // pred_fallthru
          _
        // Predicated region
        $region81: #{tpu_custom_call.1} parent=11 // pred_check
          %p524 = pneg %p432
        $region82: #{tpu_custom_call.1} parent=11 // pred_check_branch
          %526 = sbr.rel (%p524) target = $region84
        $region83: #{tpu_custom_call.1} parent=11 // pred_region
          _
        $region84: #{tpu_custom_call.1} parent=11 // pred_fallthru
          _
      $region12: #{tpu_custom_call.1} parent=5 // pred_fallthru
        _
      %p527 = scmp.lt.s32.totalorder %s28, 2
      // Predicated region
      $region85: #{tpu_custom_call.1} parent=5 // pred_check
        %p528 = pneg %p527
      $region86: #{tpu_custom_call.1} parent=5 // pred_check_branch
        %530 = sbr.rel (%p528) target = $region88
      $region87: #{tpu_custom_call.1} parent=5 // pred_region
        // Predicated region
        $region89: #{tpu_custom_call.1} parent=87 // pred_check
          %p531 = pneg %p48
        $region90: #{tpu_custom_call.1} parent=87 // pred_check_branch
          %533 = sbr.rel (%p531) target = $region92
        $region91: #{tpu_custom_call.1} parent=87 // pred_region
          %p534 = scmp.lt.s32.totalorder %s28, 1
          %s535 = scalar_select %p534, %s28, 1
          %s536 = smul.addr %s535, 2
          %s537 = scalar_lea.vmem %s0, %s536
        $region92: #{tpu_custom_call.1} parent=87 // pred_fallthru
          _
      $region88: #{tpu_custom_call.1} parent=5 // pred_fallthru
        _
      %p538 = scmp.le.s32.totalorder 1, %s28
      %p539 = scmp.lt.s32.totalorder %s28, 3
      %p540 = pnand %p538, %p539
      %p541 = pneg %p540
      // Predicated region
      $region93: #{tpu_custom_call.1} parent=5 // pred_check
        _
      $region94: #{tpu_custom_call.1} parent=5 // pred_check_branch
        %543 = sbr.rel (%p540) target = $region96
      $region95: #{tpu_custom_call.1} parent=5 // pred_region
        %s544 = ssub.s32 %s28, 1
        %p545 = scmp.lt.s32.totalorder %s33, 1
        %s546 = scalar_select %p545, %s33, 1
        %s547 = smul.addr %s546, 2
        %s548 = scalar_lea.vmem %s0, %s547
        %p549 = pneg %p54
        %p550 = pneg %p51
        %p551 = pneg %p75
        %p552 = pneg %p72
        %p553 = pneg %p96
        %p554 = pneg %p93
        %p555 = pneg %p117
        %p556 = pneg %p114
        %p557 = pneg %p138
        %p558 = pneg %p135
        %p559 = pneg %p159
        %p560 = pneg %p156
        %p561 = pneg %p180
        %p562 = pneg %p177
        %p563 = pneg %p201
        %p564 = pneg %p198
        %p565 = pneg %p222
        %p566 = pneg %p219
        %p567 = pneg %p243
        %p568 = pneg %p240
        %p569 = pneg %p264
        %p570 = pneg %p261
        %p571 = pneg %p285
        %p572 = pneg %p282
        %p573 = pneg %p306
        %p574 = pneg %p303
        %p575 = pneg %p327
        %p576 = pneg %p324
        %p577 = pneg %p348
        %p578 = pneg %p345
        %p579 = pneg %p369
        %p580 = pneg %p366
        %p581 = pneg %p390
        %p582 = pneg %p387
        %p583 = pneg %p411
        %p584 = pneg %p408
        %p585 = pneg %p432
        %p586 = pneg %p429
        %p587 = pneg %p458
        %p588 = pneg %p455
        %s589 = sand.u32 %s445, 1
        %s590 = scalar_lea.sflag [#allocation3], %s589
        %s591 = sand.u32 %s445, 1
        %s592 = scalar_lea.vmem [#allocation2], %s591
        %p593 = scmp.lt.s32.totalorder %s33, 1
        %s594 = scalar_select %p593, %s33, 1
        %s595 = smul.addr %s594, 2
        %s596 = scalar_lea.vmem %s0, %s595
        %v597 = vld [vmem:[%s596] sm:$0x3]
        %v598 = vld [vmem:[%s2] sm:$0xff]
        %v599 = vld [vmem:[%s2 + $0x8] sm:$0xff]
        %601 = vset.pattern.permute.xlu0 4
        %602 = vperm.xlu0 %601, %v598
        %v603 = vpop.permute.xlu0 %602
        %606 = vset.pattern.permute.xlu0 4
        %607 = vperm.xlu0 %606, %v599
        %v608 = vpop.permute.xlu0 %607
        %v611 = vlaneseq
        %v612 = vshrl.u32 %v611, 7
        %v613 = vsub.s32 0, %v612
        %v614 = vrot.slane %v597, %v613
        %v615 = vlaneseq
        %v616 = vshrl.u32 %v615, 7
        %v617 = vsub.s32 1, %v616
        %v618 = vrot.slane %v597, %v617
        %v621 = vmul.f32 %v603, %v614
        %v622 = vmul.f32 %v603, %v618
        %v623 = vmul.f32 %v608, %v614
        %v624 = vmul.f32 %v608, %v618
        %625 = vrot.lane.b32.xlu0 %v614, 17
        %v626 = vpop.permute.xlu0 %625
        %627 = vrot.lane.b32.xlu0 %v618, 17
        %v628 = vpop.permute.xlu0 %627
        %v629 = vlaneseq
        %v630 = vand.u32 %v629, 127
        %vm631 = vcmp.lt.s32.totalorder %v630, 17
        %v632 = vsel %vm631, %v626, %v628
        %v633 = vsel %vm631, %v628, %v626
        %v634 = vld [vmem:[%s1] ss:$8 sm:$0x3]
        %v636 = vlaneseq
        %v637 = vshrl.u32 %v636, 7
        %v638 = vsub.s32 0, %v637
        %v639 = vrot.slane %v634, %v638
        %v640 = vlaneseq
        %v641 = vshrl.u32 %v640, 7
        %v642 = vsub.s32 1, %v641
        %v643 = vrot.slane %v634, %v642
        %v646 = vmul.f32 %v633, %v639
        %v647 = vmul.f32 %v632, %v643
        %648 = vset.pattern.permute.xlu0 0
        %649 = vperm.xlu0 %648, %v598
        %v650 = vpop.permute.xlu0 %649
        %652 = vset.pattern.permute.xlu0 0
        %653 = vperm.xlu0 %652, %v599
        %v654 = vpop.permute.xlu0 %653
        %v656 = vlaneseq
        %v657 = vshrl.u32 %v656, 7
        %v658 = vsub.s32 0, %v657
        %v659 = vrot.slane %v646, %v658
        %v660 = vlaneseq
        %v661 = vshrl.u32 %v660, 7
        %v662 = vsub.s32 0, %v661
        %v663 = vrot.slane %v647, %v662
        %v664 = vmul.f32 %v650, %v659
        %v665 = vmul.f32 %v650, %v663
        %v666 = vmul.f32 %v654, %v659
        %v667 = vmul.f32 %v654, %v663
        %v668 = vadd.f32 %v621, %v664
        %v669 = vadd.f32 %v622, %v665
        %v670 = vadd.f32 %v623, %v666
        %v671 = vadd.f32 %v624, %v667
        %672 = vrot.lane.b32.xlu0 %v614, 16
        %v673 = vpop.permute.xlu0 %672
        %674 = vrot.lane.b32.xlu0 %v618, 16
        %v675 = vpop.permute.xlu0 %674
        %vm676 = vcmp.lt.s32.totalorder %v630, 16
        %v677 = vsel %vm676, %v673, %v675
        %v678 = vsel %vm676, %v675, %v673
        %s679 = scalar_lea.vmem %s1, 1
        %v680 = vld [vmem:[%s679] ss:$8 sm:$0x3]
        %v682 = vlaneseq
        %v683 = vshrl.u32 %v682, 7
        %v684 = vsub.s32 0, %v683
        %v685 = vrot.slane %v680, %v684
        %v686 = vlaneseq
        %v687 = vshrl.u32 %v686, 7
        %v688 = vsub.s32 1, %v687
        %v689 = vrot.slane %v680, %v688
        %v692 = vmul.f32 %v678, %v685
        %v693 = vmul.f32 %v677, %v689
        %694 = vset.pattern.permute.xlu0 1
        %695 = vperm.xlu0 %694, %v598
        %v696 = vpop.permute.xlu0 %695
        %698 = vset.pattern.permute.xlu0 1
        %699 = vperm.xlu0 %698, %v599
        %v700 = vpop.permute.xlu0 %699
        %v702 = vlaneseq
        %v703 = vshrl.u32 %v702, 7
        %v704 = vsub.s32 0, %v703
        %v705 = vrot.slane %v692, %v704
        %v706 = vlaneseq
        %v707 = vshrl.u32 %v706, 7
        %v708 = vsub.s32 0, %v707
        %v709 = vrot.slane %v693, %v708
        %v710 = vmul.f32 %v696, %v705
        %v711 = vmul.f32 %v696, %v709
        %v712 = vmul.f32 %v700, %v705
        %v713 = vmul.f32 %v700, %v709
        %v714 = vadd.f32 %v668, %v710
        %v715 = vadd.f32 %v669, %v711
        %v716 = vadd.f32 %v670, %v712
        %v717 = vadd.f32 %v671, %v713
        %718 = vrot.lane.b32.xlu0 %v614, 15
        %v719 = vpop.permute.xlu0 %718
        %720 = vrot.lane.b32.xlu0 %v618, 15
        %v721 = vpop.permute.xlu0 %720
        %vm722 = vcmp.lt.s32.totalorder %v630, 15
        %v723 = vsel %vm722, %v719, %v721
        %v724 = vsel %vm722, %v721, %v719
        %s725 = scalar_lea.vmem %s1, 2
        %v726 = vld [vmem:[%s725] ss:$8 sm:$0x3]
        %v728 = vlaneseq
        %v729 = vshrl.u32 %v728, 7
        %v730 = vsub.s32 0, %v729
        %v731 = vrot.slane %v726, %v730
        %v732 = vlaneseq
        %v733 = vshrl.u32 %v732, 7
        %v734 = vsub.s32 1, %v733
        %v735 = vrot.slane %v726, %v734
        %v738 = vmul.f32 %v724, %v731
        %v739 = vmul.f32 %v723, %v735
        %740 = vset.pattern.permute.xlu0 2
        %741 = vperm.xlu0 %740, %v598
        %v742 = vpop.permute.xlu0 %741
        %744 = vset.pattern.permute.xlu0 2
        %745 = vperm.xlu0 %744, %v599
        %v746 = vpop.permute.xlu0 %745
        %v748 = vlaneseq
        %v749 = vshrl.u32 %v748, 7
        %v750 = vsub.s32 0, %v749
        %v751 = vrot.slane %v738, %v750
        %v752 = vlaneseq
        %v753 = vshrl.u32 %v752, 7
        %v754 = vsub.s32 0, %v753
        %v755 = vrot.slane %v739, %v754
        %v756 = vmul.f32 %v742, %v751
        %v757 = vmul.f32 %v742, %v755
        %v758 = vmul.f32 %v746, %v751
        %v759 = vmul.f32 %v746, %v755
        %v760 = vadd.f32 %v714, %v756
        %v761 = vadd.f32 %v715, %v757
        %v762 = vadd.f32 %v716, %v758
        %v763 = vadd.f32 %v717, %v759
        %764 = vrot.lane.b32.xlu0 %v614, 1
        %v765 = vpop.permute.xlu0 %764
        %766 = vrot.lane.b32.xlu0 %v618, 1
        %v767 = vpop.permute.xlu0 %766
        %vm768 = vcmp.lt.s32.totalorder %v630, 1
        %v769 = vsel %vm768, %v765, %v767
        %v770 = vsel %vm768, %v767, %v765
        %s771 = scalar_lea.vmem %s1, 3
        %v772 = vld [vmem:[%s771] ss:$8 sm:$0x3]
        %v774 = vlaneseq
        %v775 = vshrl.u32 %v774, 7
        %v776 = vsub.s32 0, %v775
        %v777 = vrot.slane %v772, %v776
        %v778 = vlaneseq
        %v779 = vshrl.u32 %v778, 7
        %v780 = vsub.s32 1, %v779
        %v781 = vrot.slane %v772, %v780
        %v784 = vmul.f32 %v770, %v777
        %v785 = vmul.f32 %v769, %v781
        %786 = vset.pattern.permute.xlu0 3
        %787 = vperm.xlu0 %786, %v598
        %v788 = vpop.permute.xlu0 %787
        %790 = vset.pattern.permute.xlu0 3
        %791 = vperm.xlu0 %790, %v599
        %v792 = vpop.permute.xlu0 %791
        %v794 = vlaneseq
        %v795 = vshrl.u32 %v794, 7
        %v796 = vsub.s32 0, %v795
        %v797 = vrot.slane %v784, %v796
        %v798 = vlaneseq
        %v799 = vshrl.u32 %v798, 7
        %v800 = vsub.s32 0, %v799
        %v801 = vrot.slane %v785, %v800
        %v802 = vmul.f32 %v788, %v797
        %v803 = vmul.f32 %v788, %v801
        %v804 = vmul.f32 %v792, %v797
        %v805 = vmul.f32 %v792, %v801
        %v806 = vadd.f32 %v760, %v802
        %v807 = vadd.f32 %v761, %v803
        %v808 = vadd.f32 %v762, %v804
        %v809 = vadd.f32 %v763, %v805
        %810 = vrot.lane.b32.xlu0 %v614, 127
        %v811 = vpop.permute.xlu0 %810
        %812 = vrot.lane.b32.xlu0 %v618, 127
        %v813 = vpop.permute.xlu0 %812
        %vm814 = vcmp.lt.s32.totalorder %v630, 127
        %v815 = vsel %vm814, %v811, %v813
        %v816 = vsel %vm814, %v813, %v811
        %s817 = scalar_lea.vmem %s1, 5
        %v818 = vld [vmem:[%s817] ss:$8 sm:$0x3]
        %v820 = vlaneseq
        %v821 = vshrl.u32 %v820, 7
        %v822 = vsub.s32 0, %v821
        %v823 = vrot.slane %v818, %v822
        %v824 = vlaneseq
        %v825 = vshrl.u32 %v824, 7
        %v826 = vsub.s32 1, %v825
        %v827 = vrot.slane %v818, %v826
        %v830 = vmul.f32 %v815, %v823
        %v831 = vmul.f32 %v816, %v827
        %832 = vset.pattern.permute.xlu0 5
        %833 = vperm.xlu0 %832, %v598
        %v834 = vpop.permute.xlu0 %833
        %836 = vset.pattern.permute.xlu0 5
        %837 = vperm.xlu0 %836, %v599
        %v838 = vpop.permute.xlu0 %837
        %v840 = vlaneseq
        %v841 = vshrl.u32 %v840, 7
        %v842 = vsub.s32 0, %v841
        %v843 = vrot.slane %v830, %v842
        %v844 = vlaneseq
        %v845 = vshrl.u32 %v844, 7
        %v846 = vsub.s32 0, %v845
        %v847 = vrot.slane %v831, %v846
        %v848 = vmul.f32 %v834, %v843
        %v849 = vmul.f32 %v834, %v847
        %v850 = vmul.f32 %v838, %v843
        %v851 = vmul.f32 %v838, %v847
        %v852 = vadd.f32 %v806, %v848
        %v853 = vadd.f32 %v807, %v849
        %v854 = vadd.f32 %v808, %v850
        %v855 = vadd.f32 %v809, %v851
        %856 = vrot.lane.b32.xlu0 %v614, 113
        %v857 = vpop.permute.xlu0 %856
        %858 = vrot.lane.b32.xlu0 %v618, 113
        %v859 = vpop.permute.xlu0 %858
        %vm860 = vcmp.lt.s32.totalorder %v630, 113
        %v861 = vsel %vm860, %v857, %v859
        %v862 = vsel %vm860, %v859, %v857
        %s863 = scalar_lea.vmem %s1, 6
        %v864 = vld [vmem:[%s863] ss:$8 sm:$0x3]
        %v866 = vlaneseq
        %v867 = vshrl.u32 %v866, 7
        %v868 = vsub.s32 0, %v867
        %v869 = vrot.slane %v864, %v868
        %v870 = vlaneseq
        %v871 = vshrl.u32 %v870, 7
        %v872 = vsub.s32 1, %v871
        %v873 = vrot.slane %v864, %v872
        %v876 = vmul.f32 %v861, %v869
        %v877 = vmul.f32 %v862, %v873
        %878 = vset.pattern.permute.xlu0 6
        %879 = vperm.xlu0 %878, %v598
        %v880 = vpop.permute.xlu0 %879
        %882 = vset.pattern.permute.xlu0 6
        %883 = vperm.xlu0 %882, %v599
        %v884 = vpop.permute.xlu0 %883
        %v886 = vlaneseq
        %v887 = vshrl.u32 %v886, 7
        %v888 = vsub.s32 0, %v887
        %v889 = vrot.slane %v876, %v888
        %v890 = vlaneseq
        %v891 = vshrl.u32 %v890, 7
        %v892 = vsub.s32 0, %v891
        %v893 = vrot.slane %v877, %v892
        %v894 = vmul.f32 %v880, %v889
        %v895 = vmul.f32 %v880, %v893
        %v896 = vmul.f32 %v884, %v889
        %v897 = vmul.f32 %v884, %v893
        %v898 = vadd.f32 %v852, %v894
        %v899 = vadd.f32 %v853, %v895
        %v900 = vadd.f32 %v854, %v896
        %v901 = vadd.f32 %v855, %v897
        %902 = vrot.lane.b32.xlu0 %v614, 112
        %v903 = vpop.permute.xlu0 %902
        %904 = vrot.lane.b32.xlu0 %v618, 112
        %v905 = vpop.permute.xlu0 %904
        %vm906 = vcmp.lt.s32.totalorder %v630, 112
        %v907 = vsel %vm906, %v903, %v905
        %v908 = vsel %vm906, %v905, %v903
        %s909 = scalar_lea.vmem %s1, 7
        %v910 = vld [vmem:[%s909] ss:$8 sm:$0x3]
        %v912 = vlaneseq
        %v913 = vshrl.u32 %v912, 7
        %v914 = vsub.s32 0, %v913
        %v915 = vrot.slane %v910, %v914
        %v916 = vlaneseq
        %v917 = vshrl.u32 %v916, 7
        %v918 = vsub.s32 1, %v917
        %v919 = vrot.slane %v910, %v918
        %v922 = vmul.f32 %v907, %v915
        %v923 = vmul.f32 %v908, %v919
        %924 = vset.pattern.permute.xlu0 7
        %925 = vperm.xlu0 %924, %v598
        %v926 = vpop.permute.xlu0 %925
        %928 = vset.pattern.permute.xlu0 7
        %929 = vperm.xlu0 %928, %v599
        %v930 = vpop.permute.xlu0 %929
        %v932 = vlaneseq
        %v933 = vshrl.u32 %v932, 7
        %v934 = vsub.s32 0, %v933
        %v935 = vrot.slane %v922, %v934
        %v936 = vlaneseq
        %v937 = vshrl.u32 %v936, 7
        %v938 = vsub.s32 0, %v937
        %v939 = vrot.slane %v923, %v938
        %v940 = vmul.f32 %v926, %v935
        %v941 = vmul.f32 %v926, %v939
        %v942 = vmul.f32 %v930, %v935
        %v943 = vmul.f32 %v930, %v939
        %v944 = vadd.f32 %v898, %v940
        %v945 = vadd.f32 %v899, %v941
        %v946 = vadd.f32 %v900, %v942
        %v947 = vadd.f32 %v901, %v943
        %948 = vrot.lane.b32.xlu0 %v614, 111
        %v949 = vpop.permute.xlu0 %948
        %950 = vrot.lane.b32.xlu0 %v618, 111
        %v951 = vpop.permute.xlu0 %950
        %vm952 = vcmp.lt.s32.totalorder %v630, 111
        %v953 = vsel %vm952, %v949, %v951
        %v954 = vsel %vm952, %v951, %v949
        %s955 = scalar_lea.vmem %s1, 16
        %v956 = vld [vmem:[%s955] ss:$8 sm:$0x3]
        %v958 = vlaneseq
        %v959 = vshrl.u32 %v958, 7
        %v960 = vsub.s32 0, %v959
        %v961 = vrot.slane %v956, %v960
        %v962 = vlaneseq
        %v963 = vshrl.u32 %v962, 7
        %v964 = vsub.s32 1, %v963
        %v965 = vrot.slane %v956, %v964
        %v968 = vmul.f32 %v953, %v961
        %v969 = vmul.f32 %v954, %v965
        %970 = vset.pattern.permute.xlu0 8
        %971 = vperm.xlu0 %970, %v598
        %v972 = vpop.permute.xlu0 %971
        %974 = vset.pattern.permute.xlu0 8
        %975 = vperm.xlu0 %974, %v599
        %v976 = vpop.permute.xlu0 %975
        %v978 = vlaneseq
        %v979 = vshrl.u32 %v978, 7
        %v980 = vsub.s32 0, %v979
        %v981 = vrot.slane %v968, %v980
        %v982 = vlaneseq
        %v983 = vshrl.u32 %v982, 7
        %v984 = vsub.s32 0, %v983
        %v985 = vrot.slane %v969, %v984
        %v986 = vmul.f32 %v972, %v981
        %v987 = vmul.f32 %v972, %v985
        %v988 = vmul.f32 %v976, %v981
        %v989 = vmul.f32 %v976, %v985
        %v990 = vadd.f32 %v944, %v986
        %v991 = vadd.f32 %v945, %v987
        %v992 = vadd.f32 %v946, %v988
        %v993 = vadd.f32 %v947, %v989
        %v994 = vld [vmem:[%s3] sm:$0xff]
        %v995 = vld [vmem:[%s3 + $0x8] sm:$0xff]
        %997 = vset.pattern.permute.xlu0 0
        %998 = vperm.xlu0 %997, %v994
        %v999 = vpop.permute.xlu0 %998
        %1002 = vset.pattern.permute.xlu0 0
        %1003 = vperm.xlu0 %1002, %v995
        %v1004 = vpop.permute.xlu0 %1003
        %v1006 = vmul.f32 %v990, %v999
        %v1007 = vmul.f32 %v991, %v999
        %v1008 = vmul.f32 %v992, %v1004
        %v1009 = vmul.f32 %v993, %v1004
        %v1010 = vld [vmem:[%s4] sm:$0xff]
        %v1011 = vld [vmem:[%s4 + $0x8] sm:$0xff]
        %1013 = vset.pattern.permute.xlu0 0
        %1014 = vperm.xlu0 %1013, %v1010
        %v1015 = vpop.permute.xlu0 %1014
        %1018 = vset.pattern.permute.xlu0 0
        %1019 = vperm.xlu0 %1018, %v1011
        %v1020 = vpop.permute.xlu0 %1019
        %v1022 = vadd.f32 %v1006, %v1015
        %v1023 = vadd.f32 %v1007, %v1015
        %v1024 = vadd.f32 %v1008, %v1020
        %v1025 = vadd.f32 %v1009, %v1020
        %v1026 = vmax.f32 %v1022, 0.0
        %v1027 = vmax.f32 %v1023, 0.0
        %v1028 = vmax.f32 %v1024, 0.0
        %v1029 = vmax.f32 %v1025, 0.0
        %1030 = vrot.lane.b32.xlu0 %v1026, 127
        %v1031 = vpop.permute.xlu0 %1030
        %1032 = vrot.lane.b32.xlu0 %v1028, 127
        %v1033 = vpop.permute.xlu0 %1032
        %1034 = vrot.lane.b32.xlu0 %v1027, 127
        %v1035 = vpop.permute.xlu0 %1034
        %1036 = vrot.lane.b32.xlu0 %v1029, 127
        %v1037 = vpop.permute.xlu0 %1036
        %v1038 = vsel %vm814, %v1031, %v1035
        %v1039 = vsel %vm814, %v1033, %v1037
        %v1040 = vsel %vm814, %v1035, %v1031
        %v1041 = vsel %vm814, %v1037, %v1033
        %v1042 = vmax.f32 %v1026, %v1038
        %v1043 = vmax.f32 %v1027, %v1040
        %v1044 = vmax.f32 %v1028, %v1039
        %v1045 = vmax.f32 %v1029, %v1041
        %1046 = vrot.lane.b32.xlu0 %v1042, 112
        %v1047 = vpop.permute.xlu0 %1046
        %1048 = vrot.lane.b32.xlu0 %v1044, 112
        %v1049 = vpop.permute.xlu0 %1048
        %1050 = vrot.lane.b32.xlu0 %v1043, 112
        %v1051 = vpop.permute.xlu0 %1050
        %1052 = vrot.lane.b32.xlu0 %v1045, 112
        %v1053 = vpop.permute.xlu0 %1052
        %v1054 = vsel %vm906, %v1047, %v1051
        %v1055 = vsel %vm906, %v1049, %v1053
        %v1056 = vsel %vm906, %v1051, %v1047
        %v1057 = vsel %vm906, %v1053, %v1049
        %v1058 = vmax.f32 %v1042, %v1054
        %v1059 = vmax.f32 %v1043, %v1056
        %v1060 = vmax.f32 %v1044, %v1055
        %v1061 = vmax.f32 %v1045, %v1057
        %v1062 = vld [vmem:[%s6] sm:$0xff]
        %v1063 = vld [vmem:[%s6 + $0x8] sm:$0xff]
        %1065 = vset.pattern.permute.xlu0 4
        %1066 = vperm.xlu0 %1065, %v1062
        %v1067 = vpop.permute.xlu0 %1066
        %1070 = vset.pattern.permute.xlu0 4
        %1071 = vperm.xlu0 %1070, %v1063
        %v1072 = vpop.permute.xlu0 %1071
        %v1074 = vmul.f32 %v1067, %v1058
        %v1075 = vmul.f32 %v1067, %v1059
        %v1076 = vmul.f32 %v1072, %v1060
        %v1077 = vmul.f32 %v1072, %v1061
        %1078 = vrot.lane.b32.xlu0 %v1058, 34
        %v1079 = vpop.permute.xlu0 %1078
        %1080 = vrot.lane.b32.xlu0 %v1060, 34
        %v1081 = vpop.permute.xlu0 %1080
        %1082 = vrot.lane.b32.xlu0 %v1059, 34
        %v1083 = vpop.permute.xlu0 %1082
        %1084 = vrot.lane.b32.xlu0 %v1061, 34
        %v1085 = vpop.permute.xlu0 %1084
        %vm1086 = vcmp.lt.s32.totalorder %v630, 34
        %v1087 = vsel %vm1086, %v1079, %v1083
        %v1088 = vsel %vm1086, %v1081, %v1085
        %v1089 = vsel %vm1086, %v1083, %v1079
        %v1090 = vsel %vm1086, %v1085, %v1081
        %v1091 = vld [vmem:[%s5] ss:$8 sm:$0x3]
        %v1093 = vlaneseq
        %v1094 = vshrl.u32 %v1093, 7
        %v1095 = vsub.s32 0, %v1094
        %v1096 = vrot.slane %v1091, %v1095
        %v1097 = vlaneseq
        %v1098 = vshrl.u32 %v1097, 7
        %v1099 = vsub.s32 1, %v1098
        %v1100 = vrot.slane %v1091, %v1099
        %v1103 = vmul.f32 %v1089, %v1096
        %v1104 = vmul.f32 %v1087, %v1100
        %v1105 = vmul.f32 %v1090, %v1096
        %v1106 = vmul.f32 %v1088, %v1100
        %1107 = vset.pattern.permute.xlu0 0
        %1108 = vperm.xlu0 %1107, %v1062
        %v1109 = vpop.permute.xlu0 %1108
        %1111 = vset.pattern.permute.xlu0 0
        %1112 = vperm.xlu0 %1111, %v1063
        %v1113 = vpop.permute.xlu0 %1112
        %v1115 = vmul.f32 %v1109, %v1103
        %v1116 = vmul.f32 %v1109, %v1104
        %v1117 = vmul.f32 %v1113, %v1105
        %v1118 = vmul.f32 %v1113, %v1106
        %v1119 = vadd.f32 %v1074, %v1115
        %v1120 = vadd.f32 %v1075, %v1116
        %v1121 = vadd.f32 %v1076, %v1117
        %v1122 = vadd.f32 %v1077, %v1118
        %1123 = vrot.lane.b32.xlu0 %v1058, 32
        %v1124 = vpop.permute.xlu0 %1123
        %1125 = vrot.lane.b32.xlu0 %v1060, 32
        %v1126 = vpop.permute.xlu0 %1125
        %1127 = vrot.lane.b32.xlu0 %v1059, 32
        %v1128 = vpop.permute.xlu0 %1127
        %1129 = vrot.lane.b32.xlu0 %v1061, 32
        %v1130 = vpop.permute.xlu0 %1129
        %vm1131 = vcmp.lt.s32.totalorder %v630, 32
        %v1132 = vsel %vm1131, %v1124, %v1128
        %v1133 = vsel %vm1131, %v1126, %v1130
        %v1134 = vsel %vm1131, %v1128, %v1124
        %v1135 = vsel %vm1131, %v1130, %v1126
        %s1136 = scalar_lea.vmem %s5, 1
        %v1137 = vld [vmem:[%s1136] ss:$8 sm:$0x3]
        %v1139 = vlaneseq
        %v1140 = vshrl.u32 %v1139, 7
        %v1141 = vsub.s32 0, %v1140
        %v1142 = vrot.slane %v1137, %v1141
        %v1143 = vlaneseq
        %v1144 = vshrl.u32 %v1143, 7
        %v1145 = vsub.s32 1, %v1144
        %v1146 = vrot.slane %v1137, %v1145
        %v1149 = vmul.f32 %v1134, %v1142
        %v1150 = vmul.f32 %v1132, %v1146
        %v1151 = vmul.f32 %v1135, %v1142
        %v1152 = vmul.f32 %v1133, %v1146
        %1153 = vset.pattern.permute.xlu0 1
        %1154 = vperm.xlu0 %1153, %v1062
        %v1155 = vpop.permute.xlu0 %1154
        %1157 = vset.pattern.permute.xlu0 1
        %1158 = vperm.xlu0 %1157, %v1063
        %v1159 = vpop.permute.xlu0 %1158
        %v1161 = vmul.f32 %v1155, %v1149
        %v1162 = vmul.f32 %v1155, %v1150
        %v1163 = vmul.f32 %v1159, %v1151
        %v1164 = vmul.f32 %v1159, %v1152
        %v1165 = vadd.f32 %v1119, %v1161
        %v1166 = vadd.f32 %v1120, %v1162
        %v1167 = vadd.f32 %v1121, %v1163
        %v1168 = vadd.f32 %v1122, %v1164
        %1169 = vrot.lane.b32.xlu0 %v1058, 30
        %v1170 = vpop.permute.xlu0 %1169
        %1171 = vrot.lane.b32.xlu0 %v1060, 30
        %v1172 = vpop.permute.xlu0 %1171
        %1173 = vrot.lane.b32.xlu0 %v1059, 30
        %v1174 = vpop.permute.xlu0 %1173
        %1175 = vrot.lane.b32.xlu0 %v1061, 30
        %v1176 = vpop.permute.xlu0 %1175
        %vm1177 = vcmp.lt.s32.totalorder %v630, 30
        %v1178 = vsel %vm1177, %v1170, %v1174
        %v1179 = vsel %vm1177, %v1172, %v1176
        %v1180 = vsel %vm1177, %v1174, %v1170
        %v1181 = vsel %vm1177, %v1176, %v1172
        %s1182 = scalar_lea.vmem %s5, 2
        %v1183 = vld [vmem:[%s1182] ss:$8 sm:$0x3]
        %v1185 = vlaneseq
        %v1186 = vshrl.u32 %v1185, 7
        %v1187 = vsub.s32 0, %v1186
        %v1188 = vrot.slane %v1183, %v1187
        %v1189 = vlaneseq
        %v1190 = vshrl.u32 %v1189, 7
        %v1191 = vsub.s32 1, %v1190
        %v1192 = vrot.slane %v1183, %v1191
        %v1195 = vmul.f32 %v1180, %v1188
        %v1196 = vmul.f32 %v1178, %v1192
        %v1197 = vmul.f32 %v1181, %v1188
        %v1198 = vmul.f32 %v1179, %v1192
        %1199 = vset.pattern.permute.xlu0 2
        %1200 = vperm.xlu0 %1199, %v1062
        %v1201 = vpop.permute.xlu0 %1200
        %1203 = vset.pattern.permute.xlu0 2
        %1204 = vperm.xlu0 %1203, %v1063
        %v1205 = vpop.permute.xlu0 %1204
        %v1207 = vmul.f32 %v1201, %v1195
        %v1208 = vmul.f32 %v1201, %v1196
        %v1209 = vmul.f32 %v1205, %v1197
        %v1210 = vmul.f32 %v1205, %v1198
        %v1211 = vadd.f32 %v1165, %v1207
        %v1212 = vadd.f32 %v1166, %v1208
        %v1213 = vadd.f32 %v1167, %v1209
        %v1214 = vadd.f32 %v1168, %v1210
        %1215 = vrot.lane.b32.xlu0 %v1058, 2
        %v1216 = vpop.permute.xlu0 %1215
        %1217 = vrot.lane.b32.xlu0 %v1060, 2
        %v1218 = vpop.permute.xlu0 %1217
        %1219 = vrot.lane.b32.xlu0 %v1059, 2
        %v1220 = vpop.permute.xlu0 %1219
        %1221 = vrot.lane.b32.xlu0 %v1061, 2
        %v1222 = vpop.permute.xlu0 %1221
        %vm1223 = vcmp.lt.s32.totalorder %v630, 2
        %v1224 = vsel %vm1223, %v1216, %v1220
        %v1225 = vsel %vm1223, %v1218, %v1222
        %v1226 = vsel %vm1223, %v1220, %v1216
        %v1227 = vsel %vm1223, %v1222, %v1218
        %s1228 = scalar_lea.vmem %s5, 3
        %v1229 = vld [vmem:[%s1228] ss:$8 sm:$0x3]
        %v1231 = vlaneseq
        %v1232 = vshrl.u32 %v1231, 7
        %v1233 = vsub.s32 0, %v1232
        %v1234 = vrot.slane %v1229, %v1233
        %v1235 = vlaneseq
        %v1236 = vshrl.u32 %v1235, 7
        %v1237 = vsub.s32 1, %v1236
        %v1238 = vrot.slane %v1229, %v1237
        %v1241 = vmul.f32 %v1226, %v1234
        %v1242 = vmul.f32 %v1224, %v1238
        %v1243 = vmul.f32 %v1227, %v1234
        %v1244 = vmul.f32 %v1225, %v1238
        %1245 = vset.pattern.permute.xlu0 3
        %1246 = vperm.xlu0 %1245, %v1062
        %v1247 = vpop.permute.xlu0 %1246
        %1249 = vset.pattern.permute.xlu0 3
        %1250 = vperm.xlu0 %1249, %v1063
        %v1251 = vpop.permute.xlu0 %1250
        %v1253 = vmul.f32 %v1247, %v1241
        %v1254 = vmul.f32 %v1247, %v1242
        %v1255 = vmul.f32 %v1251, %v1243
        %v1256 = vmul.f32 %v1251, %v1244
        %v1257 = vadd.f32 %v1211, %v1253
        %v1258 = vadd.f32 %v1212, %v1254
        %v1259 = vadd.f32 %v1213, %v1255
        %v1260 = vadd.f32 %v1214, %v1256
        %1261 = vrot.lane.b32.xlu0 %v1058, 126
        %v1262 = vpop.permute.xlu0 %1261
        %1263 = vrot.lane.b32.xlu0 %v1060, 126
        %v1264 = vpop.permute.xlu0 %1263
        %1265 = vrot.lane.b32.xlu0 %v1059, 126
        %v1266 = vpop.permute.xlu0 %1265
        %1267 = vrot.lane.b32.xlu0 %v1061, 126
        %v1268 = vpop.permute.xlu0 %1267
        %vm1269 = vcmp.lt.s32.totalorder %v630, 126
        %v1270 = vsel %vm1269, %v1262, %v1266
        %v1271 = vsel %vm1269, %v1264, %v1268
        %v1272 = vsel %vm1269, %v1266, %v1262
        %v1273 = vsel %vm1269, %v1268, %v1264
        %s1274 = scalar_lea.vmem %s5, 5
        %v1275 = vld [vmem:[%s1274] ss:$8 sm:$0x3]
        %v1277 = vlaneseq
        %v1278 = vshrl.u32 %v1277, 7
        %v1279 = vsub.s32 0, %v1278
        %v1280 = vrot.slane %v1275, %v1279
        %v1281 = vlaneseq
        %v1282 = vshrl.u32 %v1281, 7
        %v1283 = vsub.s32 1, %v1282
        %v1284 = vrot.slane %v1275, %v1283
        %v1287 = vmul.f32 %v1270, %v1280
        %v1288 = vmul.f32 %v1272, %v1284
        %v1289 = vmul.f32 %v1271, %v1280
        %v1290 = vmul.f32 %v1273, %v1284
        %1291 = vset.pattern.permute.xlu0 5
        %1292 = vperm.xlu0 %1291, %v1062
        %v1293 = vpop.permute.xlu0 %1292
        %1295 = vset.pattern.permute.xlu0 5
        %1296 = vperm.xlu0 %1295, %v1063
        %v1297 = vpop.permute.xlu0 %1296
        %v1299 = vmul.f32 %v1293, %v1287
        %v1300 = vmul.f32 %v1293, %v1288
        %v1301 = vmul.f32 %v1297, %v1289
        %v1302 = vmul.f32 %v1297, %v1290
        %v1303 = vadd.f32 %v1257, %v1299
        %v1304 = vadd.f32 %v1258, %v1300
        %v1305 = vadd.f32 %v1259, %v1301
        %v1306 = vadd.f32 %v1260, %v1302
        %1307 = vrot.lane.b32.xlu0 %v1058, 98
        %v1308 = vpop.permute.xlu0 %1307
        %1309 = vrot.lane.b32.xlu0 %v1060, 98
        %v1310 = vpop.permute.xlu0 %1309
        %1311 = vrot.lane.b32.xlu0 %v1059, 98
        %v1312 = vpop.permute.xlu0 %1311
        %1313 = vrot.lane.b32.xlu0 %v1061, 98
        %v1314 = vpop.permute.xlu0 %1313
        %vm1315 = vcmp.lt.s32.totalorder %v630, 98
        %v1316 = vsel %vm1315, %v1308, %v1312
        %v1317 = vsel %vm1315, %v1310, %v1314
        %v1318 = vsel %vm1315, %v1312, %v1308
        %v1319 = vsel %vm1315, %v1314, %v1310
        %s1320 = scalar_lea.vmem %s5, 6
        %v1321 = vld [vmem:[%s1320] ss:$8 sm:$0x3]
        %v1323 = vlaneseq
        %v1324 = vshrl.u32 %v1323, 7
        %v1325 = vsub.s32 0, %v1324
        %v1326 = vrot.slane %v1321, %v1325
        %v1327 = vlaneseq
        %v1328 = vshrl.u32 %v1327, 7
        %v1329 = vsub.s32 1, %v1328
        %v1330 = vrot.slane %v1321, %v1329
        %v1333 = vmul.f32 %v1316, %v1326
        %v1334 = vmul.f32 %v1318, %v1330
        %v1335 = vmul.f32 %v1317, %v1326
        %v1336 = vmul.f32 %v1319, %v1330
        %1337 = vset.pattern.permute.xlu0 6
        %1338 = vperm.xlu0 %1337, %v1062
        %v1339 = vpop.permute.xlu0 %1338
        %1341 = vset.pattern.permute.xlu0 6
        %1342 = vperm.xlu0 %1341, %v1063
        %v1343 = vpop.permute.xlu0 %1342
        %v1345 = vmul.f32 %v1339, %v1333
        %v1346 = vmul.f32 %v1339, %v1334
        %v1347 = vmul.f32 %v1343, %v1335
        %v1348 = vmul.f32 %v1343, %v1336
        %v1349 = vadd.f32 %v1303, %v1345
        %v1350 = vadd.f32 %v1304, %v1346
        %v1351 = vadd.f32 %v1305, %v1347
        %v1352 = vadd.f32 %v1306, %v1348
        %1353 = vrot.lane.b32.xlu0 %v1058, 96
        %v1354 = vpop.permute.xlu0 %1353
        %1355 = vrot.lane.b32.xlu0 %v1060, 96
        %v1356 = vpop.permute.xlu0 %1355
        %1357 = vrot.lane.b32.xlu0 %v1059, 96
        %v1358 = vpop.permute.xlu0 %1357
        %1359 = vrot.lane.b32.xlu0 %v1061, 96
        %v1360 = vpop.permute.xlu0 %1359
        %vm1361 = vcmp.lt.s32.totalorder %v630, 96
        %v1362 = vsel %vm1361, %v1354, %v1358
        %v1363 = vsel %vm1361, %v1356, %v1360
        %v1364 = vsel %vm1361, %v1358, %v1354
        %v1365 = vsel %vm1361, %v1360, %v1356
        %s1366 = scalar_lea.vmem %s5, 7
        %v1367 = vld [vmem:[%s1366] ss:$8 sm:$0x3]
        %v1369 = vlaneseq
        %v1370 = vshrl.u32 %v1369, 7
        %v1371 = vsub.s32 0, %v1370
        %v1372 = vrot.slane %v1367, %v1371
        %v1373 = vlaneseq
        %v1374 = vshrl.u32 %v1373, 7
        %v1375 = vsub.s32 1, %v1374
        %v1376 = vrot.slane %v1367, %v1375
        %v1379 = vmul.f32 %v1362, %v1372
        %v1380 = vmul.f32 %v1364, %v1376
        %v1381 = vmul.f32 %v1363, %v1372
        %v1382 = vmul.f32 %v1365, %v1376
        %1383 = vset.pattern.permute.xlu0 7
        %1384 = vperm.xlu0 %1383, %v1062
        %v1385 = vpop.permute.xlu0 %1384
        %1387 = vset.pattern.permute.xlu0 7
        %1388 = vperm.xlu0 %1387, %v1063
        %v1389 = vpop.permute.xlu0 %1388
        %v1391 = vmul.f32 %v1385, %v1379
        %v1392 = vmul.f32 %v1385, %v1380
        %v1393 = vmul.f32 %v1389, %v1381
        %v1394 = vmul.f32 %v1389, %v1382
        %v1395 = vadd.f32 %v1349, %v1391
        %v1396 = vadd.f32 %v1350, %v1392
        %v1397 = vadd.f32 %v1351, %v1393
        %v1398 = vadd.f32 %v1352, %v1394
        %1399 = vrot.lane.b32.xlu0 %v1058, 94
        %v1400 = vpop.permute.xlu0 %1399
        %1401 = vrot.lane.b32.xlu0 %v1060, 94
        %v1402 = vpop.permute.xlu0 %1401
        %1403 = vrot.lane.b32.xlu0 %v1059, 94
        %v1404 = vpop.permute.xlu0 %1403
        %1405 = vrot.lane.b32.xlu0 %v1061, 94
        %v1406 = vpop.permute.xlu0 %1405
        %vm1407 = vcmp.lt.s32.totalorder %v630, 94
        %v1408 = vsel %vm1407, %v1400, %v1404
        %v1409 = vsel %vm1407, %v1402, %v1406
        %v1410 = vsel %vm1407, %v1404, %v1400
        %v1411 = vsel %vm1407, %v1406, %v1402
        %s1412 = scalar_lea.vmem %s5, 16
        %v1413 = vld [vmem:[%s1412] ss:$8 sm:$0x3]
        %v1415 = vlaneseq
        %v1416 = vshrl.u32 %v1415, 7
        %v1417 = vsub.s32 0, %v1416
        %v1418 = vrot.slane %v1413, %v1417
        %v1419 = vlaneseq
        %v1420 = vshrl.u32 %v1419, 7
        %v1421 = vsub.s32 1, %v1420
        %v1422 = vrot.slane %v1413, %v1421
        %v1425 = vmul.f32 %v1408, %v1418
        %v1426 = vmul.f32 %v1410, %v1422
        %v1427 = vmul.f32 %v1409, %v1418
        %v1428 = vmul.f32 %v1411, %v1422
        %1429 = vset.pattern.permute.xlu0 8
        %1430 = vperm.xlu0 %1429, %v1062
        %v1431 = vpop.permute.xlu0 %1430
        %1433 = vset.pattern.permute.xlu0 8
        %1434 = vperm.xlu0 %1433, %v1063
        %v1435 = vpop.permute.xlu0 %1434
        %v1437 = vmul.f32 %v1431, %v1425
        %v1438 = vmul.f32 %v1431, %v1426
        %v1439 = vmul.f32 %v1435, %v1427
        %v1440 = vmul.f32 %v1435, %v1428
        %v1441 = vadd.f32 %v1395, %v1437
        %v1442 = vadd.f32 %v1396, %v1438
        %v1443 = vadd.f32 %v1397, %v1439
        %v1444 = vadd.f32 %v1398, %v1440
        %v1445 = vld [vmem:[%s7] sm:$0xff]
        %v1446 = vld [vmem:[%s7 + $0x8] sm:$0xff]
        %1448 = vset.pattern.permute.xlu0 0
        %1449 = vperm.xlu0 %1448, %v1445
        %v1450 = vpop.permute.xlu0 %1449
        %1453 = vset.pattern.permute.xlu0 0
        %1454 = vperm.xlu0 %1453, %v1446
        %v1455 = vpop.permute.xlu0 %1454
        %v1457 = vmul.f32 %v1441, %v1450
        %v1458 = vmul.f32 %v1442, %v1450
        %v1459 = vmul.f32 %v1443, %v1455
        %v1460 = vmul.f32 %v1444, %v1455
        %v1461 = vld [vmem:[%s8] sm:$0xff]
        %v1462 = vld [vmem:[%s8 + $0x8] sm:$0xff]
        %1464 = vset.pattern.permute.xlu0 0
        %1465 = vperm.xlu0 %1464, %v1461
        %v1466 = vpop.permute.xlu0 %1465
        %1469 = vset.pattern.permute.xlu0 0
        %1470 = vperm.xlu0 %1469, %v1462
        %v1471 = vpop.permute.xlu0 %1470
        %v1473 = vadd.f32 %v1457, %v1466
        %v1474 = vadd.f32 %v1458, %v1466
        %v1475 = vadd.f32 %v1459, %v1471
        %v1476 = vadd.f32 %v1460, %v1471
        %v1477 = vmax.f32 %v1473, 0.0
        %v1478 = vmax.f32 %v1474, 0.0
        %v1479 = vmax.f32 %v1475, 0.0
        %v1480 = vmax.f32 %v1476, 0.0
        %v1481 = vld [vmem:[%s9] sm:$0xff]
        %v1482 = vld [vmem:[%s9 + $0x8] sm:$0xff]
        %v1483 = vld [vmem:[%s9 + $0x10] sm:$0xff]
        %v1484 = vld [vmem:[%s9 + $0x18] sm:$0xff]
        %vm1485 = vcmask 130048
        %v1487 = vsel %vm1485, %v1481, 0
        %v1490 = vsel %vm1485, %v1482, 0
        %v1493 = vsel %vm1485, %v1483, 0
        %v1496 = vsel %vm1485, %v1484, 0
        %1498 = vmatprep.subr.mxu0 %v1478
        %1499 = vmatpush1.msra.mxu0 %v1477
        %1500 = vmatprep.subr.mxu0 %v1480
        %1501 = vmatpush1.msra.mxu0 %v1479
        %1502 = vmatprep.subr.mxu0 0.0
        %1503 = vmatpush1.msra.mxu0 0.0
        %1504 = vmatprep.subr.mxu0 0.0
        %1505 = vmatpush1.msra.mxu0 0.0
        %1506 = vmatprep.subr.mxu0 0.0
        %1507 = vmatpush1.msra.mxu0 0.0
        %1508 = vmatprep.subr.mxu0 0.0
        %1509 = vmatpush1.msra.mxu0 0.0
        %1510 = vmatprep.subr.mxu0 0.0
        %1511 = vmatpush1.msra.mxu0 0.0
        %1512 = vmatprep.subr.mxu0 0.0
        %1513 = vmatpush1.msra.mxu0 0.0
        %1514 = vmatprep.subr.mxu0 0.0
        %1515 = vmatpush1.msra.mxu0 0.0
        %1516 = vmatprep.subr.mxu0 0.0
        %1517 = vmatpush1.msra.mxu0 0.0
        %1518 = vmatprep.subr.mxu0 0.0
        %1519 = vmatpush1.msra.mxu0 0.0
        %1520 = vmatprep.subr.mxu0 0.0
        %1521 = vmatpush1.msra.mxu0 0.0
        %1522 = vmatprep.subr.mxu0 0.0
        %1523 = vmatpush1.msra.mxu0 0.0
        %1524 = vmatprep.subr.mxu0 0.0
        %1525 = vmatpush1.msra.mxu0 0.0
        %1526 = vmatprep.subr.mxu0 0.0
        %1527 = vmatpush1.msra.mxu0 0.0
        %1528 = vmatprep.subr.mxu0 0.0
        %1529 = vmatpush1.msra.mxu0 0.0
        %1530 = vmatprep.subr.mxu0 0.0
        %1531 = vmatpush1.msra.mxu0 0.0
        %1532 = vmatprep.subr.mxu0 0.0
        %1533 = vmatpush1.msra.mxu0 0.0
        %1534 = vmatprep.subr.mxu0 0.0
        %1535 = vmatpush1.msra.mxu0 0.0
        %1536 = vmatprep.subr.mxu0 0.0
        %1537 = vmatpush1.msra.mxu0 0.0
        %1538 = vmatprep.subr.mxu0 0.0
        %1539 = vmatpush1.msra.mxu0 0.0
        %1540 = vmatprep.subr.mxu0 0.0
        %1541 = vmatpush1.msra.mxu0 0.0
        %1542 = vmatprep.subr.mxu0 0.0
        %1543 = vmatpush1.msra.mxu0 0.0
        %1544 = vmatprep.subr.mxu0 0.0
        %1545 = vmatpush1.msra.mxu0 0.0
        %1546 = vmatprep.subr.mxu0 0.0
        %1547 = vmatpush1.msra.mxu0 0.0
        %1548 = vmatprep.subr.mxu0 0.0
        %1549 = vmatpush1.msra.mxu0 0.0
        %1550 = vmatprep.subr.mxu0 0.0
        %1551 = vmatpush1.msra.mxu0 0.0
        %1552 = vmatprep.subr.mxu0 0.0
        %1553 = vmatpush1.msra.mxu0 0.0
        %1554 = vmatprep.subr.mxu0 0.0
        %1555 = vmatpush1.msra.mxu0 0.0
        %1556 = vmatprep.subr.mxu0 0.0
        %1557 = vmatpush1.msra.mxu0 0.0
        %1558 = vmatprep.subr.mxu0 0.0
        %1559 = vmatpush1.msra.mxu0 0.0
        %1560 = vmatprep.subr.mxu0 0.0
        %1561 = vmatpush1.msra.mxu0 0.0
        %1562 = vmatprep.mubr.f32.mxu0 0.0
        %1563 = vmatmul.mubr.f32.gmra.mrb[0].mxu0 %v1487
        %v1564 = vpop.f32.mrb[0].mxu0
        %v1565 = vadd.f32 0.0, %v1564
        %v1566 = vpop.f32.mrb[0].mxu0
        %v1567 = vadd.f32 0.0, %v1566
        %1568 = vmatprep.mubr.f32.mxu0 0.0
        %1569 = vmatmul.mubr.f32.gmra.mrb[0].mxu0 %v1490
        %v1570 = vpop.f32.mrb[0].mxu0
        %v1571 = vadd.f32 0.0, %v1570
        %v1572 = vpop.f32.mrb[0].mxu0
        %v1573 = vadd.f32 0.0, %v1572
        %1574 = vmatprep.mubr.f32.mxu0 0.0
        %1575 = vmatmul.mubr.f32.gmra.mrb[0].mxu0 %v1493
        %v1576 = vpop.f32.mrb[0].mxu0
        %v1577 = vadd.f32 0.0, %v1576
        %v1578 = vpop.f32.mrb[0].mxu0
        %v1579 = vadd.f32 0.0, %v1578
        %1580 = vmatprep.mubr.f32.mxu0 0.0
        %1581 = vmatmul.mubr.f32.gmra.mrb[0].mxu0 %v1496
        %v1582 = vpop.f32.mrb[0].mxu0
        %v1583 = vadd.f32 0.0, %v1582
        %v1584 = vpop.f32.mrb[0].mxu0
        %v1585 = vadd.f32 0.0, %v1584
        %1586 = vdwg.mxu0
        %v1587 = vld [vmem:[%s10] sm:$0xff]
        %v1588 = vld [vmem:[%s10 + $0x8] sm:$0xff]
        %v1589 = vld [vmem:[%s10 + $0x10] sm:$0xff]
        %v1590 = vld [vmem:[%s10 + $0x18] sm:$0xff]
        %1592 = vset.pattern.permute.xlu0 0
        %1593 = vperm.xlu0 %1592, %v1587
        %v1594 = vpop.permute.xlu0 %1593
        %1597 = vset.pattern.permute.xlu0 0
        %1598 = vperm.xlu0 %1597, %v1588
        %v1599 = vpop.permute.xlu0 %1598
        %1602 = vset.pattern.permute.xlu0 0
        %1603 = vperm.xlu0 %1602, %v1589
        %v1604 = vpop.permute.xlu0 %1603
        %1607 = vset.pattern.permute.xlu0 0
        %1608 = vperm.xlu0 %1607, %v1590
        %v1609 = vpop.permute.xlu0 %1608
        %v1611 = vmul.f32 %v1565, %v1594
        %v1612 = vmul.f32 %v1567, %v1594
        %v1613 = vmul.f32 %v1571, %v1599
        %v1614 = vmul.f32 %v1573, %v1599
        %v1615 = vmul.f32 %v1577, %v1604
        %v1616 = vmul.f32 %v1579, %v1604
        %v1617 = vmul.f32 %v1583, %v1609
        %v1618 = vmul.f32 %v1585, %v1609
        %v1619 = vld [vmem:[%s11] sm:$0xff]
        %v1620 = vld [vmem:[%s11 + $0x8] sm:$0xff]
        %v1621 = vld [vmem:[%s11 + $0x10] sm:$0xff]
        %v1622 = vld [vmem:[%s11 + $0x18] sm:$0xff]
        %1624 = vset.pattern.permute.xlu0 0
        %1625 = vperm.xlu0 %1624, %v1619
        %v1626 = vpop.permute.xlu0 %1625
        %1629 = vset.pattern.permute.xlu0 0
        %1630 = vperm.xlu0 %1629, %v1620
        %v1631 = vpop.permute.xlu0 %1630
        %1634 = vset.pattern.permute.xlu0 0
        %1635 = vperm.xlu0 %1634, %v1621
        %v1636 = vpop.permute.xlu0 %1635
        %1639 = vset.pattern.permute.xlu0 0
        %1640 = vperm.xlu0 %1639, %v1622
        %v1641 = vpop.permute.xlu0 %1640
        %v1643 = vadd.f32 %v1611, %v1626
        %v1644 = vadd.f32 %v1612, %v1626
        %v1645 = vadd.f32 %v1613, %v1631
        %v1646 = vadd.f32 %v1614, %v1631
        %v1647 = vadd.f32 %v1615, %v1636
        %v1648 = vadd.f32 %v1616, %v1636
        %v1649 = vadd.f32 %v1617, %v1641
        %v1650 = vadd.f32 %v1618, %v1641
        %v1651 = vmax.f32 %v1643, 0.0
        %v1652 = vmax.f32 %v1644, 0.0
        %v1653 = vmax.f32 %v1645, 0.0
        %v1654 = vmax.f32 %v1646, 0.0
        %v1655 = vmax.f32 %v1647, 0.0
        %v1656 = vmax.f32 %v1648, 0.0
        %v1657 = vmax.f32 %v1649, 0.0
        %v1658 = vmax.f32 %v1650, 0.0
        %v1659 = vld [vmem:[%s12] sm:$0xff]
        %v1660 = vld [vmem:[%s12 + $0x8] sm:$0xff]
        %v1661 = vld [vmem:[%s12 + $0x10] sm:$0xff]
        %v1662 = vld [vmem:[%s12 + $0x18] sm:$0xff]
        %v1663 = vld [vmem:[%s12 + $0x20] sm:$0xff]
        %v1664 = vld [vmem:[%s12 + $0x28] sm:$0xff]
        %v1665 = vld [vmem:[%s12 + $0x30] sm:$0xff]
        %v1666 = vld [vmem:[%s12 + $0x38] sm:$0xff]
        %v1667 = vld [vmem:[%s12 + $0x40] sm:$0xff]
        %v1668 = vld [vmem:[%s12 + $0x48] sm:$0xff]
        %v1669 = vld [vmem:[%s12 + $0x50] sm:$0xff]
        %v1670 = vld [vmem:[%s12 + $0x58] sm:$0xff]
        %v1671 = vld [vmem:[%s12 + $0x60] sm:$0xff]
        %v1672 = vld [vmem:[%s12 + $0x68] sm:$0xff]
        %v1673 = vld [vmem:[%s12 + $0x70] sm:$0xff]
        %v1674 = vld [vmem:[%s12 + $0x78] sm:$0xff]
        %v1675 = vld [vmem:[%s12 + $0x80] sm:$0xff]
        %v1676 = vld [vmem:[%s12 + $0x88] sm:$0xff]
        %v1677 = vld [vmem:[%s12 + $0x90] sm:$0xff]
        %v1678 = vld [vmem:[%s12 + $0x98] sm:$0xff]
        %v1679 = vld [vmem:[%s12 + $0xa0] sm:$0xff]
        %v1680 = vld [vmem:[%s12 + $0xa8] sm:$0xff]
        %v1681 = vld [vmem:[%s12 + $0xb0] sm:$0xff]
        %v1682 = vld [vmem:[%s12 + $0xb8] sm:$0xff]
        %v1683 = vld [vmem:[%s12 + $0xc0] sm:$0xff]
        %v1684 = vld [vmem:[%s12 + $0xc8] sm:$0xff]
        %v1685 = vld [vmem:[%s12 + $0xd0] sm:$0xff]
        %v1686 = vld [vmem:[%s12 + $0xd8] sm:$0xff]
        %v1687 = vld [vmem:[%s12 + $0xe0] sm:$0xff]
        %v1688 = vld [vmem:[%s12 + $0xe8] sm:$0xff]
        %v1689 = vld [vmem:[%s12 + $0xf0] sm:$0xff]
        %v1690 = vld [vmem:[%s12 + $0xf8] sm:$0xff]
        %1691 = vmatprep.subr.mxu0 0.0
        %1692 = vmatpush1.msra.mxu0 %v1659
        %1693 = vmatprep.subr.mxu0 0.0
        %1694 = vmatpush1.msra.mxu0 %v1660
        %1695 = vmatprep.subr.mxu0 0.0
        %1696 = vmatpush1.msra.mxu0 %v1661
        %1697 = vmatprep.subr.mxu0 0.0
        %1698 = vmatpush1.msra.mxu0 %v1662
        %1699 = vmatprep.subr.mxu0 0.0
        %1700 = vmatpush1.msra.mxu0 %v1663
        %1701 = vmatprep.subr.mxu0 0.0
        %1702 = vmatpush1.msra.mxu0 %v1664
        %1703 = vmatprep.subr.mxu0 0.0
        %1704 = vmatpush1.msra.mxu0 %v1665
        %1705 = vmatprep.subr.mxu0 0.0
        %1706 = vmatpush1.msra.mxu0 %v1666
        %1707 = vmatprep.subr.mxu0 0.0
        %1708 = vmatpush1.msra.mxu0 %v1667
        %1709 = vmatprep.subr.mxu0 0.0
        %1710 = vmatpush1.msra.mxu0 %v1668
        %1711 = vmatprep.subr.mxu0 0.0
        %1712 = vmatpush1.msra.mxu0 %v1669
        %1713 = vmatprep.subr.mxu0 0.0
        %1714 = vmatpush1.msra.mxu0 %v1670
        %1715 = vmatprep.subr.mxu0 0.0
        %1716 = vmatpush1.msra.mxu0 %v1671
        %1717 = vmatprep.subr.mxu0 0.0
        %1718 = vmatpush1.msra.mxu0 %v1672
        %1719 = vmatprep.subr.mxu0 0.0
        %1720 = vmatpush1.msra.mxu0 %v1673
        %1721 = vmatprep.subr.mxu0 0.0
        %1722 = vmatpush1.msra.mxu0 %v1674
        %1723 = vmatprep.subr.mxu0 0.0
        %1724 = vmatpush1.msra.mxu0 %v1675
        %1725 = vmatprep.subr.mxu0 0.0
        %1726 = vmatpush1.msra.mxu0 %v1676
        %1727 = vmatprep.subr.mxu0 0.0
        %1728 = vmatpush1.msra.mxu0 %v1677
        %1729 = vmatprep.subr.mxu0 0.0
        %1730 = vmatpush1.msra.mxu0 %v1678
        %1731 = vmatprep.subr.mxu0 0.0
        %1732 = vmatpush1.msra.mxu0 %v1679
        %1733 = vmatprep.subr.mxu0 0.0
        %1734 = vmatpush1.msra.mxu0 %v1680
        %1735 = vmatprep.subr.mxu0 0.0
        %1736 = vmatpush1.msra.mxu0 %v1681
        %1737 = vmatprep.subr.mxu0 0.0
        %1738 = vmatpush1.msra.mxu0 %v1682
        %1739 = vmatprep.subr.mxu0 0.0
        %1740 = vmatpush1.msra.mxu0 %v1683
        %1741 = vmatprep.subr.mxu0 0.0
        %1742 = vmatpush1.msra.mxu0 %v1684
        %1743 = vmatprep.subr.mxu0 0.0
        %1744 = vmatpush1.msra.mxu0 %v1685
        %1745 = vmatprep.subr.mxu0 0.0
        %1746 = vmatpush1.msra.mxu0 %v1686
        %1747 = vmatprep.subr.mxu0 0.0
        %1748 = vmatpush1.msra.mxu0 %v1687
        %1749 = vmatprep.subr.mxu0 0.0
        %1750 = vmatpush1.msra.mxu0 %v1688
        %1751 = vmatprep.subr.mxu0 0.0
        %1752 = vmatpush1.msra.mxu0 %v1689
        %1753 = vmatprep.subr.mxu0 0.0
        %1754 = vmatpush1.msra.mxu0 %v1690
        %1755 = vmatprep.mubr.f32.mxu0 %v1652
        %1756 = vmatmul.mubr.f32.gmra.mrb[0].mxu0 %v1651
        %v1757 = vpop.f32.mrb[0].mxu0
        %v1758 = vadd.f32 0.0, %v1757
        %v1759 = vpop.f32.mrb[0].mxu0
        %1760 = vmatprep.mubr.f32.mxu0 %v1654
        %1761 = vmatmul.mubr.f32.gmra.mrb[0].mxu0 %v1653
        %v1762 = vpop.f32.mrb[0].mxu0
        %v1763 = vadd.f32 0.0, %v1762
        %v1764 = vpop.f32.mrb[0].mxu0
        %1765 = vmatprep.mubr.f32.mxu0 %v1656
        %1766 = vmatmul.mubr.f32.gmra.mrb[0].mxu0 %v1655
        %v1767 = vpop.f32.mrb[0].mxu0
        %v1768 = vadd.f32 0.0, %v1767
        %v1769 = vpop.f32.mrb[0].mxu0
        %1770 = vmatprep.mubr.f32.mxu0 %v1658
        %1771 = vmatmul.mubr.f32.gmra.mrb[0].mxu0 %v1657
        %v1772 = vpop.f32.mrb[0].mxu0
        %v1773 = vadd.f32 0.0, %v1772
        %v1774 = vpop.f32.mrb[0].mxu0
        %1775 = vdwg.mxu0
        %1780 = vrot.lane.b32.xlu0 %v1758, 112
        %v1781 = vpop.permute.xlu0 %1780
        %1782 = vrot.lane.b32.xlu0 %v1763, 112
        %v1783 = vpop.permute.xlu0 %1782
        %1784 = vrot.lane.b32.xlu0 %v1768, 112
        %v1785 = vpop.permute.xlu0 %1784
        %1786 = vrot.lane.b32.xlu0 %v1773, 112
        %v1787 = vpop.permute.xlu0 %1786
        %v1792 = vmax.f32 %v1758, %v1781
        %v1793 = vmax.f32 %v1763, %v1783
        %v1794 = vmax.f32 %v1768, %v1785
        %v1795 = vmax.f32 %v1773, %v1787
        %1796 = vrot.lane.b32.xlu0 %v1758, 96
        %v1797 = vpop.permute.xlu0 %1796
        %1798 = vrot.lane.b32.xlu0 %v1763, 96
        %v1799 = vpop.permute.xlu0 %1798
        %1800 = vrot.lane.b32.xlu0 %v1768, 96
        %v1801 = vpop.permute.xlu0 %1800
        %1802 = vrot.lane.b32.xlu0 %v1773, 96
        %v1803 = vpop.permute.xlu0 %1802
        %v1808 = vmax.f32 %v1792, %v1797
        %v1809 = vmax.f32 %v1793, %v1799
        %v1810 = vmax.f32 %v1794, %v1801
        %v1811 = vmax.f32 %v1795, %v1803
        %1812 = vrot.lane.b32.xlu0 %v1758, 80
        %v1813 = vpop.permute.xlu0 %1812
        %1814 = vrot.lane.b32.xlu0 %v1763, 80
        %v1815 = vpop.permute.xlu0 %1814
        %1816 = vrot.lane.b32.xlu0 %v1768, 80
        %v1817 = vpop.permute.xlu0 %1816
        %1818 = vrot.lane.b32.xlu0 %v1773, 80
        %v1819 = vpop.permute.xlu0 %1818
        %v1824 = vmax.f32 %v1808, %v1813
        %v1825 = vmax.f32 %v1809, %v1815
        %v1826 = vmax.f32 %v1810, %v1817
        %v1827 = vmax.f32 %v1811, %v1819
        %v1828 = vld [vmem:[%s13] sm:$0xff]
        %v1829 = vld [vmem:[%s13 + $0x8] sm:$0xff]
        %v1830 = vld [vmem:[%s13 + $0x10] sm:$0xff]
        %v1831 = vld [vmem:[%s13 + $0x18] sm:$0xff]
        %v1832 = vld [vmem:[%s13 + $0x20] sm:$0xff]
        %v1833 = vld [vmem:[%s13 + $0x28] sm:$0xff]
        %v1834 = vld [vmem:[%s13 + $0x30] sm:$0xff]
        %v1835 = vld [vmem:[%s13 + $0x38] sm:$0xff]
        %v1837 = vsel %vm1485, %v1824, 0
        %v1840 = vsel %vm1485, %v1825, 0
        %v1843 = vsel %vm1485, %v1826, 0
        %v1846 = vsel %vm1485, %v1827, 0
        %1848 = vmatprep.subr.mxu0 %v1829
        %1849 = vmatpush1.msra.mxu0 %v1828
        %1850 = vmatprep.subr.mxu0 %v1833
        %1851 = vmatpush1.msra.mxu0 %v1832
        %1852 = vmatprep.subr.mxu0 0.0
        %1853 = vmatpush1.msra.mxu0 0.0
        %1854 = vmatprep.subr.mxu0 0.0
        %1855 = vmatpush1.msra.mxu0 0.0
        %1856 = vmatprep.subr.mxu0 0.0
        %1857 = vmatpush1.msra.mxu0 0.0
        %1858 = vmatprep.subr.mxu0 0.0
        %1859 = vmatpush1.msra.mxu0 0.0
        %1860 = vmatprep.subr.mxu0 0.0
        %1861 = vmatpush1.msra.mxu0 0.0
        %1862 = vmatprep.subr.mxu0 0.0
        %1863 = vmatpush1.msra.mxu0 0.0
        %1864 = vmatprep.subr.mxu0 0.0
        %1865 = vmatpush1.msra.mxu0 0.0
        %1866 = vmatprep.subr.mxu0 0.0
        %1867 = vmatpush1.msra.mxu0 0.0
        %1868 = vmatprep.subr.mxu0 0.0
        %1869 = vmatpush1.msra.mxu0 0.0
        %1870 = vmatprep.subr.mxu0 0.0
        %1871 = vmatpush1.msra.mxu0 0.0
        %1872 = vmatprep.subr.mxu0 0.0
        %1873 = vmatpush1.msra.mxu0 0.0
        %1874 = vmatprep.subr.mxu0 0.0
        %1875 = vmatpush1.msra.mxu0 0.0
        %1876 = vmatprep.subr.mxu0 0.0
        %1877 = vmatpush1.msra.mxu0 0.0
        %1878 = vmatprep.subr.mxu0 0.0
        %1879 = vmatpush1.msra.mxu0 0.0
        %1880 = vmatprep.subr.mxu0 0.0
        %1881 = vmatpush1.msra.mxu0 0.0
        %1882 = vmatprep.subr.mxu0 0.0
        %1883 = vmatpush1.msra.mxu0 0.0
        %1884 = vmatprep.subr.mxu0 0.0
        %1885 = vmatpush1.msra.mxu0 0.0
        %1886 = vmatprep.subr.mxu0 0.0
        %1887 = vmatpush1.msra.mxu0 0.0
        %1888 = vmatprep.subr.mxu0 0.0
        %1889 = vmatpush1.msra.mxu0 0.0
        %1890 = vmatprep.subr.mxu0 0.0
        %1891 = vmatpush1.msra.mxu0 0.0
        %1892 = vmatprep.subr.mxu0 0.0
        %1893 = vmatpush1.msra.mxu0 0.0
        %1894 = vmatprep.subr.mxu0 0.0
        %1895 = vmatpush1.msra.mxu0 0.0
        %1896 = vmatprep.subr.mxu0 0.0
        %1897 = vmatpush1.msra.mxu0 0.0
        %1898 = vmatprep.subr.mxu0 0.0
        %1899 = vmatpush1.msra.mxu0 0.0
        %1900 = vmatprep.subr.mxu0 0.0
        %1901 = vmatpush1.msra.mxu0 0.0
        %1902 = vmatprep.subr.mxu0 0.0
        %1903 = vmatpush1.msra.mxu0 0.0
        %1904 = vmatprep.subr.mxu0 0.0
        %1905 = vmatpush1.msra.mxu0 0.0
        %1906 = vmatprep.subr.mxu0 0.0
        %1907 = vmatpush1.msra.mxu0 0.0
        %1908 = vmatprep.subr.mxu0 0.0
        %1909 = vmatpush1.msra.mxu0 0.0
        %1910 = vmatprep.subr.mxu0 0.0
        %1911 = vmatpush1.msra.mxu0 0.0
        %1912 = vmatprep.mubr.f32.mxu0 0.0
        %1913 = vmatmul.mubr.f32.gmra.mrb[0].mxu0 %v1837
        %v1914 = vpop.f32.mrb[0].mxu0
        %v1915 = vadd.f32 0.0, %v1914
        %v1916 = vpop.f32.mrb[0].mxu0
        %v1917 = vadd.f32 0.0, %v1916
        %1918 = vmatprep.mubr.f32.mxu0 0.0
        %1919 = vmatmul.mubr.f32.gmra.mrb[0].mxu0 %v1840
        %v1920 = vpop.f32.mrb[0].mxu0
        %v1921 = vadd.f32 0.0, %v1920
        %v1922 = vpop.f32.mrb[0].mxu0
        %v1923 = vadd.f32 0.0, %v1922
        %1924 = vmatprep.mubr.f32.mxu0 0.0
        %1925 = vmatmul.mubr.f32.gmra.mrb[0].mxu0 %v1843
        %v1926 = vpop.f32.mrb[0].mxu0
        %v1927 = vadd.f32 0.0, %v1926
        %v1928 = vpop.f32.mrb[0].mxu0
        %v1929 = vadd.f32 0.0, %v1928
        %1930 = vmatprep.mubr.f32.mxu0 0.0
        %1931 = vmatmul.mubr.f32.gmra.mrb[0].mxu0 %v1846
        %v1932 = vpop.f32.mrb[0].mxu0
        %v1933 = vadd.f32 0.0, %v1932
        %v1934 = vpop.f32.mrb[0].mxu0
        %v1935 = vadd.f32 0.0, %v1934
        %1936 = vdwg.mxu0
        %1937 = vmatprep.subr.mxu0 %v1831
        %1938 = vmatpush1.msra.mxu0 %v1830
        %1939 = vmatprep.subr.mxu0 %v1835
        %1940 = vmatpush1.msra.mxu0 %v1834
        %1941 = vmatprep.subr.mxu0 0.0
        %1942 = vmatpush1.msra.mxu0 0.0
        %1943 = vmatprep.subr.mxu0 0.0
        %1944 = vmatpush1.msra.mxu0 0.0
        %1945 = vmatprep.subr.mxu0 0.0
        %1946 = vmatpush1.msra.mxu0 0.0
        %1947 = vmatprep.subr.mxu0 0.0
        %1948 = vmatpush1.msra.mxu0 0.0
        %1949 = vmatprep.subr.mxu0 0.0
        %1950 = vmatpush1.msra.mxu0 0.0
        %1951 = vmatprep.subr.mxu0 0.0
        %1952 = vmatpush1.msra.mxu0 0.0
        %1953 = vmatprep.subr.mxu0 0.0
        %1954 = vmatpush1.msra.mxu0 0.0
        %1955 = vmatprep.subr.mxu0 0.0
        %1956 = vmatpush1.msra.mxu0 0.0
        %1957 = vmatprep.subr.mxu0 0.0
        %1958 = vmatpush1.msra.mxu0 0.0
        %1959 = vmatprep.subr.mxu0 0.0
        %1960 = vmatpush1.msra.mxu0 0.0
        %1961 = vmatprep.subr.mxu0 0.0
        %1962 = vmatpush1.msra.mxu0 0.0
        %1963 = vmatprep.subr.mxu0 0.0
        %1964 = vmatpush1.msra.mxu0 0.0
        %1965 = vmatprep.subr.mxu0 0.0
        %1966 = vmatpush1.msra.mxu0 0.0
        %1967 = vmatprep.subr.mxu0 0.0
        %1968 = vmatpush1.msra.mxu0 0.0
        %1969 = vmatprep.subr.mxu0 0.0
        %1970 = vmatpush1.msra.mxu0 0.0
        %1971 = vmatprep.subr.mxu0 0.0
        %1972 = vmatpush1.msra.mxu0 0.0
        %1973 = vmatprep.subr.mxu0 0.0
        %1974 = vmatpush1.msra.mxu0 0.0
        %1975 = vmatprep.subr.mxu0 0.0
        %1976 = vmatpush1.msra.mxu0 0.0
        %1977 = vmatprep.subr.mxu0 0.0
        %1978 = vmatpush1.msra.mxu0 0.0
        %1979 = vmatprep.subr.mxu0 0.0
        %1980 = vmatpush1.msra.mxu0 0.0
        %1981 = vmatprep.subr.mxu0 0.0
        %1982 = vmatpush1.msra.mxu0 0.0
        %1983 = vmatprep.subr.mxu0 0.0
        %1984 = vmatpush1.msra.mxu0 0.0
        %1985 = vmatprep.subr.mxu0 0.0
        %1986 = vmatpush1.msra.mxu0 0.0
        %1987 = vmatprep.subr.mxu0 0.0
        %1988 = vmatpush1.msra.mxu0 0.0
        %1989 = vmatprep.subr.mxu0 0.0
        %1990 = vmatpush1.msra.mxu0 0.0
        %1991 = vmatprep.subr.mxu0 0.0
        %1992 = vmatpush1.msra.mxu0 0.0
        %1993 = vmatprep.subr.mxu0 0.0
        %1994 = vmatpush1.msra.mxu0 0.0
        %1995 = vmatprep.subr.mxu0 0.0
        %1996 = vmatpush1.msra.mxu0 0.0
        %1997 = vmatprep.subr.mxu0 0.0
        %1998 = vmatpush1.msra.mxu0 0.0
        %1999 = vmatprep.subr.mxu0 0.0
        %2000 = vmatpush1.msra.mxu0 0.0
        %2001 = vmatprep.mubr.f32.mxu0 0.0
        %2002 = vmatmul.mubr.f32.gmra.mrb[0].mxu0 %v1837
        %v2003 = vpop.f32.mrb[0].mxu0
        %v2004 = vadd.f32 0.0, %v2003
        %v2005 = vpop.f32.mrb[0].mxu0
        %v2006 = vadd.f32 0.0, %v2005
        %2007 = vmatprep.mubr.f32.mxu0 0.0
        %2008 = vmatmul.mubr.f32.gmra.mrb[0].mxu0 %v1840
        %v2009 = vpop.f32.mrb[0].mxu0
        %v2010 = vadd.f32 0.0, %v2009
        %v2011 = vpop.f32.mrb[0].mxu0
        %v2012 = vadd.f32 0.0, %v2011
        %2013 = vmatprep.mubr.f32.mxu0 0.0
        %2014 = vmatmul.mubr.f32.gmra.mrb[0].mxu0 %v1843
        %v2015 = vpop.f32.mrb[0].mxu0
        %v2016 = vadd.f32 0.0, %v2015
        %v2017 = vpop.f32.mrb[0].mxu0
        %v2018 = vadd.f32 0.0, %v2017
        %2019 = vmatprep.mubr.f32.mxu0 0.0
        %2020 = vmatmul.mubr.f32.gmra.mrb[0].mxu0 %v1846
        %v2021 = vpop.f32.mrb[0].mxu0
        %v2022 = vadd.f32 0.0, %v2021
        %v2023 = vpop.f32.mrb[0].mxu0
        %v2024 = vadd.f32 0.0, %v2023
        %2025 = vdwg.mxu0
        %v2026 = vld [vmem:[%s14] sm:$0xff]
        %v2027 = vld [vmem:[%s14 + $0x8] sm:$0xff]
        %v2028 = vld [vmem:[%s14 + $0x10] sm:$0xff]
        %v2029 = vld [vmem:[%s14 + $0x18] sm:$0xff]
        %v2030 = vld [vmem:[%s14 + $0x20] sm:$0xff]
        %v2031 = vld [vmem:[%s14 + $0x28] sm:$0xff]
        %v2032 = vld [vmem:[%s14 + $0x30] sm:$0xff]
        %v2033 = vld [vmem:[%s14 + $0x38] sm:$0xff]
        %v2034 = vld [vmem:[%s14 + $0x40] sm:$0xff]
        %v2035 = vld [vmem:[%s14 + $0x48] sm:$0xff]
        %v2036 = vld [vmem:[%s14 + $0x50] sm:$0xff]
        %v2037 = vld [vmem:[%s14 + $0x58] sm:$0xff]
        %v2038 = vld [vmem:[%s14 + $0x60] sm:$0xff]
        %v2039 = vld [vmem:[%s14 + $0x68] sm:$0xff]
        %v2040 = vld [vmem:[%s14 + $0x70] sm:$0xff]
        %v2041 = vld [vmem:[%s14 + $0x78] sm:$0xff]
        %v2042 = vmul.f32 %v1915, %v2026
        %v2043 = vmul.f32 %v1917, %v2027
        %v2044 = vmul.f32 %v2004, %v2028
        %v2045 = vmul.f32 %v2006, %v2029
        %v2046 = vmul.f32 %v1921, %v2030
        %v2047 = vmul.f32 %v1923, %v2031
        %v2048 = vmul.f32 %v2010, %v2032
        %v2049 = vmul.f32 %v2012, %v2033
        %v2050 = vmul.f32 %v1927, %v2034
        %v2051 = vmul.f32 %v1929, %v2035
        %v2052 = vmul.f32 %v2016, %v2036
        %v2053 = vmul.f32 %v2018, %v2037
        %v2054 = vmul.f32 %v1933, %v2038
        %v2055 = vmul.f32 %v1935, %v2039
        %v2056 = vmul.f32 %v2022, %v2040
        %v2057 = vmul.f32 %v2024, %v2041
        %v2058 = vld [vmem:[%s15] sm:$0xff]
        %v2059 = vld [vmem:[%s15 + $0x8] sm:$0xff]
        %v2060 = vld [vmem:[%s15 + $0x10] sm:$0xff]
        %v2061 = vld [vmem:[%s15 + $0x18] sm:$0xff]
        %v2062 = vld [vmem:[%s15 + $0x20] sm:$0xff]
        %v2063 = vld [vmem:[%s15 + $0x28] sm:$0xff]
        %v2064 = vld [vmem:[%s15 + $0x30] sm:$0xff]
        %v2065 = vld [vmem:[%s15 + $0x38] sm:$0xff]
        %v2066 = vld [vmem:[%s15 + $0x40] sm:$0xff]
        %v2067 = vld [vmem:[%s15 + $0x48] sm:$0xff]
        %v2068 = vld [vmem:[%s15 + $0x50] sm:$0xff]
        %v2069 = vld [vmem:[%s15 + $0x58] sm:$0xff]
        %v2070 = vld [vmem:[%s15 + $0x60] sm:$0xff]
        %v2071 = vld [vmem:[%s15 + $0x68] sm:$0xff]
        %v2072 = vld [vmem:[%s15 + $0x70] sm:$0xff]
        %v2073 = vld [vmem:[%s15 + $0x78] sm:$0xff]
        %v2074 = vld [vmem:[%s15 + $0x80] sm:$0xff]
        %v2075 = vld [vmem:[%s15 + $0x88] sm:$0xff]
        %v2076 = vld [vmem:[%s15 + $0x90] sm:$0xff]
        %v2077 = vld [vmem:[%s15 + $0x98] sm:$0xff]
        %v2078 = vld [vmem:[%s15 + $0xa0] sm:$0xff]
        %v2079 = vld [vmem:[%s15 + $0xa8] sm:$0xff]
        %v2080 = vld [vmem:[%s15 + $0xb0] sm:$0xff]
        %v2081 = vld [vmem:[%s15 + $0xb8] sm:$0xff]
        %v2082 = vld [vmem:[%s15 + $0xc0] sm:$0xff]
        %v2083 = vld [vmem:[%s15 + $0xc8] sm:$0xff]
        %v2084 = vld [vmem:[%s15 + $0xd0] sm:$0xff]
        %v2085 = vld [vmem:[%s15 + $0xd8] sm:$0xff]
        %v2086 = vld [vmem:[%s15 + $0xe0] sm:$0xff]
        %v2087 = vld [vmem:[%s15 + $0xe8] sm:$0xff]
        %v2088 = vld [vmem:[%s15 + $0xf0] sm:$0xff]
        %v2089 = vld [vmem:[%s15 + $0xf8] sm:$0xff]
        %v2090 = vld [vmem:[%s15 + $0x100] sm:$0xff]
        %v2091 = vld [vmem:[%s15 + $0x108] sm:$0xff]
        %v2092 = vld [vmem:[%s15 + $0x110] sm:$0xff]
        %v2093 = vld [vmem:[%s15 + $0x118] sm:$0xff]
        %v2094 = vld [vmem:[%s15 + $0x120] sm:$0xff]
        %v2095 = vld [vmem:[%s15 + $0x128] sm:$0xff]
        %v2096 = vld [vmem:[%s15 + $0x130] sm:$0xff]
        %v2097 = vld [vmem:[%s15 + $0x138] sm:$0xff]
        %v2098 = vld [vmem:[%s15 + $0x140] sm:$0xff]
        %v2099 = vld [vmem:[%s15 + $0x148] sm:$0xff]
        %v2100 = vld [vmem:[%s15 + $0x150] sm:$0xff]
        %v2101 = vld [vmem:[%s15 + $0x158] sm:$0xff]
        %v2102 = vld [vmem:[%s15 + $0x160] sm:$0xff]
        %v2103 = vld [vmem:[%s15 + $0x168] sm:$0xff]
        %v2104 = vld [vmem:[%s15 + $0x170] sm:$0xff]
        %v2105 = vld [vmem:[%s15 + $0x178] sm:$0xff]
        %v2106 = vld [vmem:[%s15 + $0x180] sm:$0xff]
        %v2107 = vld [vmem:[%s15 + $0x188] sm:$0xff]
        %v2108 = vld [vmem:[%s15 + $0x190] sm:$0xff]
        %v2109 = vld [vmem:[%s15 + $0x198] sm:$0xff]
        %v2110 = vld [vmem:[%s15 + $0x1a0] sm:$0xff]
        %v2111 = vld [vmem:[%s15 + $0x1a8] sm:$0xff]
        %v2112 = vld [vmem:[%s15 + $0x1b0] sm:$0xff]
        %v2113 = vld [vmem:[%s15 + $0x1b8] sm:$0xff]
        %v2114 = vld [vmem:[%s15 + $0x1c0] sm:$0xff]
        %v2115 = vld [vmem:[%s15 + $0x1c8] sm:$0xff]
        %v2116 = vld [vmem:[%s15 + $0x1d0] sm:$0xff]
        %v2117 = vld [vmem:[%s15 + $0x1d8] sm:$0xff]
        %v2118 = vld [vmem:[%s15 + $0x1e0] sm:$0xff]
        %v2119 = vld [vmem:[%s15 + $0x1e8] sm:$0xff]
        %v2120 = vld [vmem:[%s15 + $0x1f0] sm:$0xff]
        %v2121 = vld [vmem:[%s15 + $0x1f8] sm:$0xff]
        %2122 = vmatprep.subr.mxu0 0.0
        %2123 = vmatpush1.msra.mxu0 %v2058
        %2124 = vmatprep.subr.mxu0 0.0
        %2125 = vmatpush1.msra.mxu0 %v2059
        %2126 = vmatprep.subr.mxu0 0.0
        %2127 = vmatpush1.msra.mxu0 %v2060
        %2128 = vmatprep.subr.mxu0 0.0
        %2129 = vmatpush1.msra.mxu0 %v2061
        %2130 = vmatprep.subr.mxu0 0.0
        %2131 = vmatpush1.msra.mxu0 %v2062
        %2132 = vmatprep.subr.mxu0 0.0
        %2133 = vmatpush1.msra.mxu0 %v2063
        %2134 = vmatprep.subr.mxu0 0.0
        %2135 = vmatpush1.msra.mxu0 %v2064
        %2136 = vmatprep.subr.mxu0 0.0
        %2137 = vmatpush1.msra.mxu0 %v2065
        %2138 = vmatprep.subr.mxu0 0.0
        %2139 = vmatpush1.msra.mxu0 %v2066
        %2140 = vmatprep.subr.mxu0 0.0
        %2141 = vmatpush1.msra.mxu0 %v2067
        %2142 = vmatprep.subr.mxu0 0.0
        %2143 = vmatpush1.msra.mxu0 %v2068
        %2144 = vmatprep.subr.mxu0 0.0
        %2145 = vmatpush1.msra.mxu0 %v2069
        %2146 = vmatprep.subr.mxu0 0.0
        %2147 = vmatpush1.msra.mxu0 %v2070
        %2148 = vmatprep.subr.mxu0 0.0
        %2149 = vmatpush1.msra.mxu0 %v2071
        %2150 = vmatprep.subr.mxu0 0.0
        %2151 = vmatpush1.msra.mxu0 %v2072
        %2152 = vmatprep.subr.mxu0 0.0
        %2153 = vmatpush1.msra.mxu0 %v2073
        %2154 = vmatprep.subr.mxu0 0.0
        %2155 = vmatpush1.msra.mxu0 %v2074
        %2156 = vmatprep.subr.mxu0 0.0
        %2157 = vmatpush1.msra.mxu0 %v2075
        %2158 = vmatprep.subr.mxu0 0.0
        %2159 = vmatpush1.msra.mxu0 %v2076
        %2160 = vmatprep.subr.mxu0 0.0
        %2161 = vmatpush1.msra.mxu0 %v2077
        %2162 = vmatprep.subr.mxu0 0.0
        %2163 = vmatpush1.msra.mxu0 %v2078
        %2164 = vmatprep.subr.mxu0 0.0
        %2165 = vmatpush1.msra.mxu0 %v2079
        %2166 = vmatprep.subr.mxu0 0.0
        %2167 = vmatpush1.msra.mxu0 %v2080
        %2168 = vmatprep.subr.mxu0 0.0
        %2169 = vmatpush1.msra.mxu0 %v2081
        %2170 = vmatprep.subr.mxu0 0.0
        %2171 = vmatpush1.msra.mxu0 %v2082
        %2172 = vmatprep.subr.mxu0 0.0
        %2173 = vmatpush1.msra.mxu0 %v2083
        %2174 = vmatprep.subr.mxu0 0.0
        %2175 = vmatpush1.msra.mxu0 %v2084
        %2176 = vmatprep.subr.mxu0 0.0
        %2177 = vmatpush1.msra.mxu0 %v2085
        %2178 = vmatprep.subr.mxu0 0.0
        %2179 = vmatpush1.msra.mxu0 %v2086
        %2180 = vmatprep.subr.mxu0 0.0
        %2181 = vmatpush1.msra.mxu0 %v2087
        %2182 = vmatprep.subr.mxu0 0.0
        %2183 = vmatpush1.msra.mxu0 %v2088
        %2184 = vmatprep.subr.mxu0 0.0
        %2185 = vmatpush1.msra.mxu0 %v2089
        %2186 = vmatprep.mubr.f32.mxu0 %v2043
        %2187 = vmatmul.mubr.f32.gmra.mrb[0].mxu0 %v2042
        %v2188 = vpop.f32.mrb[0].mxu0
        %v2189 = vadd.f32 0.0, %v2188
        %v2190 = vpop.f32.mrb[0].mxu0
        %2191 = vmatprep.mubr.f32.mxu0 %v2047
        %2192 = vmatmul.mubr.f32.gmra.mrb[0].mxu0 %v2046
        %v2193 = vpop.f32.mrb[0].mxu0
        %v2194 = vadd.f32 0.0, %v2193
        %v2195 = vpop.f32.mrb[0].mxu0
        %2196 = vmatprep.mubr.f32.mxu0 %v2051
        %2197 = vmatmul.mubr.f32.gmra.mrb[0].mxu0 %v2050
        %v2198 = vpop.f32.mrb[0].mxu0
        %v2199 = vadd.f32 0.0, %v2198
        %v2200 = vpop.f32.mrb[0].mxu0
        %2201 = vmatprep.mubr.f32.mxu0 %v2055
        %2202 = vmatmul.mubr.f32.gmra.mrb[0].mxu0 %v2054
        %v2203 = vpop.f32.mrb[0].mxu0
        %v2204 = vadd.f32 0.0, %v2203
        %v2205 = vpop.f32.mrb[0].mxu0
        %2206 = vdwg.mxu0
        %2207 = vmatprep.subr.mxu0 0.0
        %2208 = vmatpush1.msra.mxu0 %v2090
        %2209 = vmatprep.subr.mxu0 0.0
        %2210 = vmatpush1.msra.mxu0 %v2091
        %2211 = vmatprep.subr.mxu0 0.0
        %2212 = vmatpush1.msra.mxu0 %v2092
        %2213 = vmatprep.subr.mxu0 0.0
        %2214 = vmatpush1.msra.mxu0 %v2093
        %2215 = vmatprep.subr.mxu0 0.0
        %2216 = vmatpush1.msra.mxu0 %v2094
        %2217 = vmatprep.subr.mxu0 0.0
        %2218 = vmatpush1.msra.mxu0 %v2095
        %2219 = vmatprep.subr.mxu0 0.0
        %2220 = vmatpush1.msra.mxu0 %v2096
        %2221 = vmatprep.subr.mxu0 0.0
        %2222 = vmatpush1.msra.mxu0 %v2097
        %2223 = vmatprep.subr.mxu0 0.0
        %2224 = vmatpush1.msra.mxu0 %v2098
        %2225 = vmatprep.subr.mxu0 0.0
        %2226 = vmatpush1.msra.mxu0 %v2099
        %2227 = vmatprep.subr.mxu0 0.0
        %2228 = vmatpush1.msra.mxu0 %v2100
        %2229 = vmatprep.subr.mxu0 0.0
        %2230 = vmatpush1.msra.mxu0 %v2101
        %2231 = vmatprep.subr.mxu0 0.0
        %2232 = vmatpush1.msra.mxu0 %v2102
        %2233 = vmatprep.subr.mxu0 0.0
        %2234 = vmatpush1.msra.mxu0 %v2103
        %2235 = vmatprep.subr.mxu0 0.0
        %2236 = vmatpush1.msra.mxu0 %v2104
        %2237 = vmatprep.subr.mxu0 0.0
        %2238 = vmatpush1.msra.mxu0 %v2105
        %2239 = vmatprep.subr.mxu0 0.0
        %2240 = vmatpush1.msra.mxu0 %v2106
        %2241 = vmatprep.subr.mxu0 0.0
        %2242 = vmatpush1.msra.mxu0 %v2107
        %2243 = vmatprep.subr.mxu0 0.0
        %2244 = vmatpush1.msra.mxu0 %v2108
        %2245 = vmatprep.subr.mxu0 0.0
        %2246 = vmatpush1.msra.mxu0 %v2109
        %2247 = vmatprep.subr.mxu0 0.0
        %2248 = vmatpush1.msra.mxu0 %v2110
        %2249 = vmatprep.subr.mxu0 0.0
        %2250 = vmatpush1.msra.mxu0 %v2111
        %2251 = vmatprep.subr.mxu0 0.0
        %2252 = vmatpush1.msra.mxu0 %v2112
        %2253 = vmatprep.subr.mxu0 0.0
        %2254 = vmatpush1.msra.mxu0 %v2113
        %2255 = vmatprep.subr.mxu0 0.0
        %2256 = vmatpush1.msra.mxu0 %v2114
        %2257 = vmatprep.subr.mxu0 0.0
        %2258 = vmatpush1.msra.mxu0 %v2115
        %2259 = vmatprep.subr.mxu0 0.0
        %2260 = vmatpush1.msra.mxu0 %v2116
        %2261 = vmatprep.subr.mxu0 0.0
        %2262 = vmatpush1.msra.mxu0 %v2117
        %2263 = vmatprep.subr.mxu0 0.0
        %2264 = vmatpush1.msra.mxu0 %v2118
        %2265 = vmatprep.subr.mxu0 0.0
        %2266 = vmatpush1.msra.mxu0 %v2119
        %2267 = vmatprep.subr.mxu0 0.0
        %2268 = vmatpush1.msra.mxu0 %v2120
        %2269 = vmatprep.subr.mxu0 0.0
        %2270 = vmatpush1.msra.mxu0 %v2121
        %2271 = vmatprep.mubr.f32.mxu0 %v2045
        %2272 = vmatmul.mubr.f32.gmra.mrb[0].mxu0 %v2044
        %v2273 = vpop.f32.mrb[0].mxu0
        %v2274 = vadd.f32 %v2189, %v2273
        %v2275 = vpop.f32.mrb[0].mxu0
        %2276 = vmatprep.mubr.f32.mxu0 %v2049
        %2277 = vmatmul.mubr.f32.gmra.mrb[0].mxu0 %v2048
        %v2278 = vpop.f32.mrb[0].mxu0
        %v2279 = vadd.f32 %v2194, %v2278
        %v2280 = vpop.f32.mrb[0].mxu0
        %2281 = vmatprep.mubr.f32.mxu0 %v2053
        %2282 = vmatmul.mubr.f32.gmra.mrb[0].mxu0 %v2052
        %v2283 = vpop.f32.mrb[0].mxu0
        %v2284 = vadd.f32 %v2199, %v2283
        %v2285 = vpop.f32.mrb[0].mxu0
        %2286 = vmatprep.mubr.f32.mxu0 %v2057
        %2287 = vmatmul.mubr.f32.gmra.mrb[0].mxu0 %v2056
        %v2288 = vpop.f32.mrb[0].mxu0
        %v2289 = vadd.f32 %v2204, %v2288
        %v2290 = vpop.f32.mrb[0].mxu0
        %2291 = vdwg.mxu0
        %vm2292 = vcmask 523264
        %v2293 = vsel %vm2292, %v2274, 0.0
        %v2294 = vsel %vm2292, %v2279, 0.0
        %v2295 = vadd.f32 %v2293, %v2294
        %v2296 = vsel %vm2292, %v2284, 0.0
        %v2297 = vadd.f32 %v2295, %v2296
        %v2298 = vsel %vm2292, %v2289, 0.0
        %v2299 = vadd.f32 %v2297, %v2298
        %v2300 = vrot.slane %v2299, 4
        %v2301 = vadd.f32 %v2299, %v2300
        %v2302 = vrot.slane %v2301, 2
        %v2303 = vadd.f32 %v2301, %v2302
        %v2304 = vrot.slane %v2303, 1
        %v2305 = vadd.f32 %v2303, %v2304
        %v2306 = vld [vmem:[%s16] sm:$0x1]
        %v2307 = vadd.f32 %v2305, %v2306
        %v2308 = vmax.f32 %v2307, 0.0
        %v2309 = vld [vmem:[%s17] sm:$0xff]
        %v2310 = vld [vmem:[%s17 + $0x8] sm:$0xff]
        %v2311 = vld [vmem:[%s17 + $0x10] sm:$0xff]
        %v2312 = vld [vmem:[%s17 + $0x18] sm:$0xff]
        %v2313 = vld [vmem:[%s17 + $0x20] sm:$0xff]
        %v2314 = vld [vmem:[%s17 + $0x28] sm:$0xff]
        %v2315 = vld [vmem:[%s17 + $0x30] sm:$0xff]
        %v2316 = vld [vmem:[%s17 + $0x38] sm:$0xff]
        %v2317 = vld [vmem:[%s18] sm:$0x1]
        %v2319 = vsel %vm2292, %v2308, 0
        %2321 = vmatprep.subr.mxu0 0.0
        %2322 = vmatpush1.msra.mxu0 %v2309
        %2323 = vmatprep.subr.mxu0 0.0
        %2324 = vmatpush1.msra.mxu0 %v2310
        %2325 = vmatprep.subr.mxu0 0.0
        %2326 = vmatpush1.msra.mxu0 %v2311
        %2327 = vmatprep.subr.mxu0 0.0
        %2328 = vmatpush1.msra.mxu0 %v2312
        %2329 = vmatprep.subr.mxu0 0.0
        %2330 = vmatpush1.msra.mxu0 %v2313
        %2331 = vmatprep.subr.mxu0 0.0
        %2332 = vmatpush1.msra.mxu0 %v2314
        %2333 = vmatprep.subr.mxu0 0.0
        %2334 = vmatpush1.msra.mxu0 %v2315
        %2335 = vmatprep.subr.mxu0 0.0
        %2336 = vmatpush1.msra.mxu0 %v2316
        %2337 = vmatprep.subr.mxu0 0.0
        %2338 = vmatpush1.msra.mxu0 0.0
        %2339 = vmatprep.subr.mxu0 0.0
        %2340 = vmatpush1.msra.mxu0 0.0
        %2341 = vmatprep.subr.mxu0 0.0
        %2342 = vmatpush1.msra.mxu0 0.0
        %2343 = vmatprep.subr.mxu0 0.0
        %2344 = vmatpush1.msra.mxu0 0.0
        %2345 = vmatprep.subr.mxu0 0.0
        %2346 = vmatpush1.msra.mxu0 0.0
        %2347 = vmatprep.subr.mxu0 0.0
        %2348 = vmatpush1.msra.mxu0 0.0
        %2349 = vmatprep.subr.mxu0 0.0
        %2350 = vmatpush1.msra.mxu0 0.0
        %2351 = vmatprep.subr.mxu0 0.0
        %2352 = vmatpush1.msra.mxu0 0.0
        %2353 = vmatprep.subr.mxu0 0.0
        %2354 = vmatpush1.msra.mxu0 0.0
        %2355 = vmatprep.subr.mxu0 0.0
        %2356 = vmatpush1.msra.mxu0 0.0
        %2357 = vmatprep.subr.mxu0 0.0
        %2358 = vmatpush1.msra.mxu0 0.0
        %2359 = vmatprep.subr.mxu0 0.0
        %2360 = vmatpush1.msra.mxu0 0.0
        %2361 = vmatprep.subr.mxu0 0.0
        %2362 = vmatpush1.msra.mxu0 0.0
        %2363 = vmatprep.subr.mxu0 0.0
        %2364 = vmatpush1.msra.mxu0 0.0
        %2365 = vmatprep.subr.mxu0 0.0
        %2366 = vmatpush1.msra.mxu0 0.0
        %2367 = vmatprep.subr.mxu0 0.0
        %2368 = vmatpush1.msra.mxu0 0.0
        %2369 = vmatprep.subr.mxu0 0.0
        %2370 = vmatpush1.msra.mxu0 0.0
        %2371 = vmatprep.subr.mxu0 0.0
        %2372 = vmatpush1.msra.mxu0 0.0
        %2373 = vmatprep.subr.mxu0 0.0
        %2374 = vmatpush1.msra.mxu0 0.0
        %2375 = vmatprep.subr.mxu0 0.0
        %2376 = vmatpush1.msra.mxu0 0.0
        %2377 = vmatprep.subr.mxu0 0.0
        %2378 = vmatpush1.msra.mxu0 0.0
        %2379 = vmatprep.subr.mxu0 0.0
        %2380 = vmatpush1.msra.mxu0 0.0
        %2381 = vmatprep.subr.mxu0 0.0
        %2382 = vmatpush1.msra.mxu0 0.0
        %2383 = vmatprep.subr.mxu0 0.0
        %2384 = vmatpush1.msra.mxu0 0.0
        %2385 = vmatprep.mubr.f32.mxu0 0.0
        %2386 = vmatmul.mubr.f32.gmra.mrb[0].mxu0 %v2319
        %v2387 = vpop.f32.mrb[0].mxu0
        %v2388 = vadd.f32 %v2317, %v2387
        %v2389 = vpop.f32.mrb[0].mxu0
        %2390 = vdwg.mxu0
        %2391 = vst [vmem:[%s592] sm:$0x1] %v2388
        %s2392 = sand.u32 %s445, 1
        %s2393 = scalar_lea.sflag [#allocation3], %s2392
        %s2394 = sand.u32 %s445, 1
        %s2395 = scalar_lea.vmem [#allocation2], %s2394
        // Predicated region
        $region97: #{tpu_custom_call.1} parent=95 // pred_check
          %p2396 = pneg %p455
        $region98: #{tpu_custom_call.1} parent=95 // pred_check_branch
          %2398 = sbr.rel (%p2396) target = $region100
        $region99: #{tpu_custom_call.1} parent=95 // pred_region
          %s2400 = ssub.s32 16, 16
          %2401 = vsyncadd %s2393, %s2400
          %s2402 = smul.addr %s33, 16
          %s2403 = scalar_lea.hbm %s19, %s2402
          %s2405 = sshll.u32 %s2395, 4
          %s2406 = int_to_ptr.vmem [resolvable:$true] %s2405
          %2408 = dma.vmem_to_hbm [thread:$0]  %s2406, 16, %s2403, %s2393
        $region100: #{tpu_custom_call.1} parent=95 // pred_fallthru
          _
      $region96: #{tpu_custom_call.1} parent=5 // pred_fallthru
        _
      %p2409 = scmp.le.s32.totalorder 2, %s28
      // Predicated region
      $region101: #{tpu_custom_call.1} parent=5 // pred_check
        %p2410 = pneg %p2409
      $region102: #{tpu_custom_call.1} parent=5 // pred_check_branch
        %2412 = sbr.rel (%p2410) target = $region104
      $region103: #{tpu_custom_call.1} parent=5 // pred_region
        %s2413 = ssub.s32 %s28, 2
        // Predicated region
        $region105: #{tpu_custom_call.1} parent=103 // pred_check
          %p2414 = pneg %p461
        $region106: #{tpu_custom_call.1} parent=103 // pred_check_branch
          %2416 = sbr.rel (%p2414) target = $region108
        $region107: #{tpu_custom_call.1} parent=103 // pred_region
          %s2417 = sand.u32 %s446, 1
          %s2418 = scalar_lea.sflag [#allocation3], %s2417
          %s2419 = sand.u32 %s446, 1
          %s2420 = scalar_lea.vmem [#allocation2], %s2419
          %2421 = dma.done %s2418, 16
        $region108: #{tpu_custom_call.1} parent=103 // pred_fallthru
          _
      $region104: #{tpu_custom_call.1} parent=5 // pred_fallthru
        _
    $region6: #{tpu_custom_call.1} parent=1 // loop_footer
      %s32 = sadd.s32 1, %s28
    $region7: #{tpu_custom_call.1} parent=1 // loop_footer_branch
      %27 = sbr.rel target = $region3
    $region8: #{tpu_custom_call.1} parent=1 // loop_exit
      _
    %2422 = vsyncpa [#allocation3], 1
    %s2423 = scalar_lea.sflag [#allocation3], 1
    %2424 = vsyncpa %s2423, 1

</llo_original>
